<compile_context>
chip_gen: v7x
topology: tpu7x:2x2x1
jax: 0.10.0
libtpu: 0.0.40
codegen_flags: <defaults>
</compile_context>

<pallas_src>
import functools

import jax
import jax.numpy as jnp
from jax.experimental import pallas as pl
from jax.experimental.pallas import tpu as pltpu

DEC_LANES = 128  # decoder output padded to one dense 128-lane slab


def _agent_rollout_kernel(x_ref, hx0_ref, cx0_ref, wih_ref, whh_ref, b_ref,
                          wdec_ref, bdec_ref, logits_ref, final_ref, state_s,
                          *, agent_dim, chunk_steps, total_steps, num_chunks,
                          inv_temperature, tanh_c, train):
    H = agent_dim
    C = chunk_steps
    T = total_steps
    chunk = pl.program_id(0)

    # Bring the recurrent state into registers for this chunk.
    if num_chunks == 1:
        hx = hx0_ref[...]
        cx = cx0_ref[...]
    else:
        @pl.when(chunk == 0)
        def _init():
            state_s[:, :H] = hx0_ref[...]
            state_s[:, H:] = cx0_ref[...]

        hx = state_s[:, :H]
        cx = state_s[:, H:]

    last_chunk = (T - 1) // C
    last_c = (T - 1) % C

    # Fully unrolled chunk of time steps; hx/cx stay in vregs for the whole chunk.
    for c in range(C):
        # Input projection is independent of the recurrence, so the scheduler can
        # pull it off the per-step critical path across the unrolled iterations.
        xg = jnp.dot(x_ref[c], wih_ref[...], preferred_element_type=jnp.float32)
        gates = (xg
                 + jnp.dot(hx, whh_ref[...], preferred_element_type=jnp.float32)
                 + b_ref[...])

        # One full-width sigmoid + one full-width tanh, then slice the quadrants.
        sig = jax.nn.sigmoid(gates)
        th = jnp.tanh(gates)
        i_g = sig[:, 0 * H:1 * H]
        f_g = sig[:, 1 * H:2 * H]
        g_g = th[:, 2 * H:3 * H]
        o_g = sig[:, 3 * H:4 * H]

        cy = f_g * cx + i_g * g_g
        hy = o_g * jnp.tanh(cy)

        # decoders[-1] = Linear(H, 2), zero-padded to 128 lanes so the per-step
        # logits store is a single dense (unmasked) [B, 128] vst.  Padded lanes have
        # zero weight & bias so they stay exactly 0 through /T and tanh.
        logits = (jnp.dot(hy, wdec_ref[...], preferred_element_type=jnp.float32)
                  + bdec_ref[...])
        logits = logits * inv_temperature
        if train:
            logits = tanh_c * jnp.tanh(logits)

        logits_ref[c] = logits.astype(logits_ref.dtype)

        # Final hidden state is written once, at the last *real* step only.
        if c == last_c:
            if num_chunks == 1:
                final_ref[:, :H] = hy
                final_ref[:, H:] = cy
            else:
                @pl.when(chunk == last_chunk)
                def _write_final(hy=hy, cy=cy):
                    final_ref[:, :H] = hy
                    final_ref[:, H:] = cy

        hx, cx = hy, cy

    # Persist the recurrent state only across chunk boundaries.
    if num_chunks > 1:
        state_s[:, :H] = hx
        state_s[:, H:] = cx


def fuse_params(params):
    """Fold the raw (already [in, out]-transposed) params into the kernel layout."""
    dec_out = params["w_dec"].shape[1]
    return {
        "w_ih": params["w_ih"],                                   # [3H, 4H]
        "w_hh": params["w_hh"],                                   # [H, 4H]
        "b": params["b_ih"] + params["b_hh"],                     # [1, 4H]
        "w_dec_p": jnp.pad(params["w_dec"],
                           ((0, 0), (0, DEC_LANES - dec_out))),   # [H, 128]
        "b_dec_p": jnp.pad(params["b_dec"],
                           ((0, 0), (0, DEC_LANES - dec_out))),   # [1, 128]
    }


def agent_rollout(xs, hidden, fused, *, softmax_temperature, tanh_c,
                  train=True, chunk_steps=None):
    """Run T Agent.forward steps (state carried) inside one pallas_call.

    xs:      [T, B, 3*agent_dim]
    hidden:  (hx0 [B, H], cx0 [B, H])
    fused:   output of fuse_params()
    returns: (logits [T, B, 2], (hx [B, H], cx [B, H]))  -- final hidden state
    """
    hx0, cx0 = hidden
    T, B, D = xs.shape
    H = hx0.shape[1]
    assert D == 3 * H, "expected transe input layout cat(ent(h), ent(t), rel(r))"

    C = min(T, 16) if chunk_steps is None else max(1, min(chunk_steps, T))
    num_chunks = pl.cdiv(T, C)
    T_pad = num_chunks * C
    if T_pad != T:
        # Padded time steps run with x=0; they only write to sliced-off output rows
        # and happen strictly after the final-state write, so semantics are unchanged.
        xs = jnp.pad(xs, ((0, T_pad - T), (0, 0), (0, 0)))

    kernel = functools.partial(
        _agent_rollout_kernel,
        agent_dim=H, chunk_steps=C, total_steps=T, num_chunks=num_chunks,
        inv_temperature=1.0 / softmax_temperature, tanh_c=tanh_c, train=train)

    grid_spec = pltpu.PrefetchScalarGridSpec(
        num_scalar_prefetch=0,
        grid=(num_chunks,),
        in_specs=[
            # per-chunk input tile (C time steps per grid iteration)
            pl.BlockSpec((C, B, 3 * H), lambda g: (g, 0, 0)),
            # initial hidden state (read only at chunk == 0)
            pl.BlockSpec((B, H), lambda g: (0, 0)),
            pl.BlockSpec((B, H), lambda g: (0, 0)),
            # weights/biases: constant block index -> DMA'd once, VMEM-resident
            pl.BlockSpec((3 * H, 4 * H), lambda g: (0, 0)),
            pl.BlockSpec((H, 4 * H), lambda g: (0, 0)),
            pl.BlockSpec((1, 4 * H), lambda g: (0, 0)),
            pl.BlockSpec((H, DEC_LANES), lambda g: (0, 0)),
            pl.BlockSpec((1, DEC_LANES), lambda g: (0, 0)),
        ],
        out_specs=[
            # lane-dense per-step logits slab
            pl.BlockSpec((C, B, DEC_LANES), lambda g: (g, 0, 0)),
            # final (hx | cx), written once at the last real step
            pl.BlockSpec((B, 2 * H), lambda g: (0, 0)),
        ],
        scratch_shapes=[
            pltpu.VMEM((B, 2 * H), jnp.float32),   # state carry across chunks
        ],
    )

    logits_pad, final_state = pl.pallas_call(
        kernel,
        grid_spec=grid_spec,
        out_shape=(jax.ShapeDtypeStruct((T_pad, B, DEC_LANES), jnp.float32),
                   jax.ShapeDtypeStruct((B, 2 * H), jnp.float32)),
        compiler_params=pltpu.CompilerParams(dimension_semantics=("arbitrary",)),
    )(xs, hx0, cx0, fused["w_ih"], fused["w_hh"], fused["b"],
      fused["w_dec_p"], fused["b_dec_p"])

    logits = logits_pad[:T, :, :2]
    hx = final_state[:, :H]
    cx = final_state[:, H:]
    return logits, (hx, cx)


def agent_forward(x, hidden, fused, *, softmax_temperature, tanh_c, train=True):
    """Single Agent.forward step (T=1 rollout)."""
    logits, hc = agent_rollout(x[None], hidden, fused,
                               softmax_temperature=softmax_temperature,
                               tanh_c=tanh_c, train=train)
    return logits[0], hc


def _reference_step(x, hidden, params, *, softmax_temperature, tanh_c, train=True):
    """Plain-JAX reference mirroring torch.nn.LSTMCell + Linear semantics."""
    hx, cx = hidden
    H = hx.shape[1]
    gates = (x @ params["w_ih"] + hx @ params["w_hh"]
             + params["b_ih"] + params["b_hh"])
    i = jax.nn.sigmoid(gates[:, 0 * H:1 * H])
    f = jax.nn.sigmoid(gates[:, 1 * H:2 * H])
    g = jnp.tanh(gates[:, 2 * H:3 * H])
    o = jax.nn.sigmoid(gates[:, 3 * H:4 * H])
    cy = f * cx + i * g
    hy = o * jnp.tanh(cy)
    logits = hy @ params["w_dec"] + params["b_dec"]
    logits = logits / softmax_temperature
    if train:
        logits = tanh_c * jnp.tanh(logits)
    return logits, (hy, cy)


def _reference_rollout(xs, hidden, params, **kw):
    logits = []
    h = hidden
    for t in range(xs.shape[0]):
        lg, h = _reference_step(xs[t], h, params, **kw)
        logits.append(lg)
    return jnp.stack(logits), h


def init_params(key, agent_dim, input_mult=3, init_range=0.1):
    """Mirror Agent.reset_parameters: uniform(-0.1, 0.1), decoder bias = 0."""
    H = agent_dim
    D = input_mult * H
    ks = jax.random.split(key, 6)
    u = lambda k, shape: jax.random.uniform(
        k, shape, jnp.float32, -init_range, init_range)
    return {
        "w_ih": u(ks[0], (D, 4 * H)),     # LSTMCell weight_ih, pre-transposed
        "w_hh": u(ks[1], (H, 4 * H)),     # LSTMCell weight_hh, pre-transposed
        "b_ih": u(ks[2], (1, 4 * H)),
        "b_hh": u(ks[3], (1, 4 * H)),
        "w_dec": u(ks[4], (H, 2)),        # decoders[1] = Linear(H, 2), pre-transposed
        "b_dec": jnp.zeros((1, 2), jnp.float32),  # decoder.bias.data.fill_(0)
    }


if __name__ == "__main__":
    # args: batch_size=8, agent_dim=32, LP_model='transe' (-> input = 3*agent_dim),
    #       softmax_temperature=5.0, tanh_c=2.5, mode='train'; rollout of T=5 steps
    #       (as in Agent.sample's batched loop, state carried across steps).
    B, H, T = 8, 32, 5
    softmax_temperature = 5.0
    tanh_c = 2.5
    kw = dict(softmax_temperature=softmax_temperature, tanh_c=tanh_c, train=True)

    key = jax.random.PRNGKey(0)
    k_p, k_x, k_h, k_c = jax.random.split(key, 4)

    params = init_params(k_p, H, input_mult=3)
    fused = fuse_params(params)

    xs = jax.random.normal(k_x, (T, B, 3 * H), jnp.float32)  # per-step triple embeds
    hx0 = jax.random.normal(k_h, (B, H), jnp.float32)        # sample(): hidden = randn
    cx0 = jax.random.normal(k_c, (B, H), jnp.float32)

    # Single-chunk rollout (whole T in one grid step for small T).
    logits, (hx, cx) = agent_rollout(xs, (hx0, cx0), fused, **kw)
    jax.block_until_ready((logits, hx, cx))

    # Single-step path (Agent.forward signature).
    logits1, (hx1, cx1) = agent_forward(xs[0], (hx0, cx0), fused, **kw)
    jax.block_until_ready((logits1, hx1, cx1))

    # Plain-JAX reference rollout.
    ref_logits, (ref_hx, ref_cx) = _reference_rollout(xs, (hx0, cx0), params, **kw)
    ref_logits1, (ref_hx1, ref_cx1) = _reference_step(xs[0], (hx0, cx0), params, **kw)

    assert logits.shape == (T, B, 2) and hx.shape == (B, H) and cx.shape == (B, H)
    assert jnp.allclose(logits, ref_logits, atol=1e-4, rtol=1e-4)
    assert jnp.allclose(hx, ref_hx, atol=1e-4, rtol=1e-4)
    assert jnp.allclose(cx, ref_cx, atol=1e-4, rtol=1e-4)
    assert logits1.shape == (B, 2) and hx1.shape == (B, H) and cx1.shape == (B, H)
    assert jnp.allclose(logits1, ref_logits1, atol=1e-4, rtol=1e-4)
    assert jnp.allclose(hx1, ref_hx1, atol=1e-4, rtol=1e-4)
    assert jnp.allclose(cx1, ref_cx1, atol=1e-4, rtol=1e-4)

    # Multi-chunk path with time padding (T=7, C=3 -> 3 chunks, T_pad=9).
    T2 = 7
    xs2 = jax.random.normal(jax.random.PRNGKey(1), (T2, B, 3 * H), jnp.float32)
    logits2, (hx2, cx2) = agent_rollout(xs2, (hx0, cx0), fused, chunk_steps=3, **kw)
    jax.block_until_ready((logits2, hx2, cx2))
    ref_logits2, (ref_hx2, ref_cx2) = _reference_rollout(xs2, (hx0, cx0), params, **kw)
    assert logits2.shape == (T2, B, 2)
    assert jnp.allclose(logits2, ref_logits2, atol=1e-4, rtol=1e-4)
    assert jnp.allclose(hx2, ref_hx2, atol=1e-4, rtol=1e-4)
    assert jnp.allclose(cx2, ref_cx2, atol=1e-4, rtol=1e-4)

    print("KERNEL_OK")
</pallas_src>

<mosaic_0001>
module attributes {stable_mosaic.version = 11 : i64} {
  func.func @_agent_rollout_kernel(%arg0: i32, %arg1: memref<5x8x96xf32, #tpu.memory_space<vmem>>, %arg2: memref<8x32xf32, #tpu.memory_space<vmem>>, %arg3: memref<8x32xf32, #tpu.memory_space<vmem>>, %arg4: memref<96x128xf32, #tpu.memory_space<vmem>>, %arg5: memref<32x128xf32, #tpu.memory_space<vmem>>, %arg6: memref<1x128xf32, #tpu.memory_space<vmem>>, %arg7: memref<32x128xf32, #tpu.memory_space<vmem>>, %arg8: memref<1x128xf32, #tpu.memory_space<vmem>>, %arg9: memref<5x8x128xf32, #tpu.memory_space<vmem>>, %arg10: memref<8x64xf32, #tpu.memory_space<vmem>>, %arg11: memref<8x64xf32, #tpu.memory_space<vmem>>) attributes {dimension_semantics = [#tpu.dimension_semantics<arbitrary>], iteration_bounds = array<i64: 1>, scalar_prefetch = 0 : i64, scratch_operands = 1 : i64, tpu.core_type = #tpu.core_type<tc>, window_params = [{transform_indices = @transform_0, window_bounds = array<i64: 5, 8, 96>}, {pipeline_mode = #tpu.pipeline_mode<synchronous>, transform_indices = @transform_1, window_bounds = array<i64: 8, 32>}, {pipeline_mode = #tpu.pipeline_mode<synchronous>, transform_indices = @transform_2, window_bounds = array<i64: 8, 32>}, {pipeline_mode = #tpu.pipeline_mode<synchronous>, transform_indices = @transform_3, window_bounds = array<i64: 96, 128>}, {pipeline_mode = #tpu.pipeline_mode<synchronous>, transform_indices = @transform_4, window_bounds = array<i64: 32, 128>}, {pipeline_mode = #tpu.pipeline_mode<synchronous>, transform_indices = @transform_5, window_bounds = array<i64: 1, 128>}, {pipeline_mode = #tpu.pipeline_mode<synchronous>, transform_indices = @transform_6, window_bounds = array<i64: 32, 128>}, {pipeline_mode = #tpu.pipeline_mode<synchronous>, transform_indices = @transform_7, window_bounds = array<i64: 1, 128>}, {transform_indices = @transform_8, window_bounds = array<i64: 5, 8, 128>}, {pipeline_mode = #tpu.pipeline_mode<synchronous>, transform_indices = @transform_9, window_bounds = array<i64: 8, 64>}]} {
    %c0 = arith.constant 0 : index
    %c0_0 = arith.constant 0 : index
    %0 = vector.load %arg2[%c0, %c0_0] : memref<8x32xf32, #tpu.memory_space<vmem>>, vector<8x32xf32>
    %c0_1 = arith.constant 0 : index
    %c0_2 = arith.constant 0 : index
    %1 = vector.load %arg3[%c0_1, %c0_2] : memref<8x32xf32, #tpu.memory_space<vmem>>, vector<8x32xf32>
    %c0_3 = arith.constant 0 : index
    %c0_4 = arith.constant 0 : index
    %c0_5 = arith.constant 0 : index
    %2 = vector.load %arg1[%c0_3, %c0_4, %c0_5] : memref<5x8x96xf32, #tpu.memory_space<vmem>>, vector<1x8x96xf32>
    %3 = vector.shape_cast %2 : vector<1x8x96xf32> to vector<8x96xf32>
    %c0_6 = arith.constant 0 : index
    %c0_7 = arith.constant 0 : index
    %4 = vector.load %arg4[%c0_6, %c0_7] : memref<96x128xf32, #tpu.memory_space<vmem>>, vector<96x128xf32>
    %cst = arith.constant dense<0.000000e+00> : vector<8x128xf32>
    %5 = tpu.matmul %3, %4, %cst {dimension_numbers = #tpu.dot_dimension_numbers<[1], [0], [0], [1], [0, 0, 1, 1], [], []>} : vector<8x96xf32>, vector<96x128xf32>, vector<8x128xf32> -> vector<8x128xf32>
    %c0_8 = arith.constant 0 : index
    %c0_9 = arith.constant 0 : index
    %6 = vector.load %arg5[%c0_8, %c0_9] : memref<32x128xf32, #tpu.memory_space<vmem>>, vector<32x128xf32>
    %cst_10 = arith.constant dense<0.000000e+00> : vector<8x128xf32>
    %7 = tpu.matmul %0, %6, %cst_10 {dimension_numbers = #tpu.dot_dimension_numbers<[1], [0], [0], [1], [0, 0, 1, 1], [], []>} : vector<8x32xf32>, vector<32x128xf32>, vector<8x128xf32> -> vector<8x128xf32>
    %8 = arith.addf %5, %7 : vector<8x128xf32>
    %c0_11 = arith.constant 0 : index
    %c0_12 = arith.constant 0 : index
    %9 = vector.load %arg6[%c0_11, %c0_12] : memref<1x128xf32, #tpu.memory_space<vmem>>, vector<1x128xf32>
    %10 = vector.broadcast %9 : vector<1x128xf32> to vector<8x128xf32>
    %11 = arith.addf %8, %10 : vector<8x128xf32>
    %12 = arith.negf %11 : vector<8x128xf32>
    %13 = math.exp %12 : vector<8x128xf32>
    %cst_13 = arith.constant 1.000000e+00 : f32
    %14 = vector.broadcast %cst_13 : f32 to vector<8x128xf32>
    %15 = arith.addf %14, %13 : vector<8x128xf32>
    %16 = arith.divf %14, %15 : vector<8x128xf32>
    %17 = math.tanh %11 : vector<8x128xf32>
    %18 = vector.extract_strided_slice %16 {offsets = [0, 0], sizes = [8, 32], strides = [1, 1]} : vector<8x128xf32> to vector<8x32xf32>
    %19 = vector.extract_strided_slice %16 {offsets = [0, 32], sizes = [8, 32], strides = [1, 1]} : vector<8x128xf32> to vector<8x32xf32>
    %20 = vector.extract_strided_slice %17 {offsets = [0, 64], sizes = [8, 32], strides = [1, 1]} : vector<8x128xf32> to vector<8x32xf32>
    %21 = vector.extract_strided_slice %16 {offsets = [0, 96], sizes = [8, 32], strides = [1, 1]} : vector<8x128xf32> to vector<8x32xf32>
    %22 = arith.mulf %19, %1 : vector<8x32xf32>
    %23 = arith.mulf %18, %20 : vector<8x32xf32>
    %24 = arith.addf %22, %23 : vector<8x32xf32>
    %25 = math.tanh %24 : vector<8x32xf32>
    %26 = arith.mulf %21, %25 : vector<8x32xf32>
    %c0_14 = arith.constant 0 : index
    %c0_15 = arith.constant 0 : index
    %27 = vector.load %arg7[%c0_14, %c0_15] : memref<32x128xf32, #tpu.memory_space<vmem>>, vector<32x128xf32>
    %cst_16 = arith.constant dense<0.000000e+00> : vector<8x128xf32>
    %28 = tpu.matmul %26, %27, %cst_16 {dimension_numbers = #tpu.dot_dimension_numbers<[1], [0], [0], [1], [0, 0, 1, 1], [], []>} : vector<8x32xf32>, vector<32x128xf32>, vector<8x128xf32> -> vector<8x128xf32>
    %c0_17 = arith.constant 0 : index
    %c0_18 = arith.constant 0 : index
    %29 = vector.load %arg8[%c0_17, %c0_18] : memref<1x128xf32, #tpu.memory_space<vmem>>, vector<1x128xf32>
    %30 = vector.broadcast %29 : vector<1x128xf32> to vector<8x128xf32>
    %31 = arith.addf %28, %30 : vector<8x128xf32>
    %cst_19 = arith.constant 2.000000e-01 : f32
    %32 = vector.broadcast %cst_19 : f32 to vector<8x128xf32>
    %33 = arith.mulf %31, %32 : vector<8x128xf32>
    %34 = math.tanh %33 : vector<8x128xf32>
    %cst_20 = arith.constant 2.500000e+00 : f32
    %35 = vector.broadcast %cst_20 : f32 to vector<8x128xf32>
    %36 = arith.mulf %35, %34 : vector<8x128xf32>
    %c0_21 = arith.constant 0 : index
    %c0_22 = arith.constant 0 : index
    %c0_23 = arith.constant 0 : index
    %37 = vector.load %arg9[%c0_21, %c0_22, %c0_23] : memref<5x8x128xf32, #tpu.memory_space<vmem>>, vector<1x8x128xf32>
    %38 = vector.shape_cast %37 : vector<1x8x128xf32> to vector<8x128xf32>
    %39 = vector.shape_cast %36 : vector<8x128xf32> to vector<1x8x128xf32>
    tpu.vector_store %arg9[%c0_21, %c0_22, %c0_23], %39 {strides = array<i32>} : memref<5x8x128xf32, #tpu.memory_space<vmem>>, vector<1x8x128xf32>,
    %c1 = arith.constant 1 : index
    %c0_24 = arith.constant 0 : index
    %c0_25 = arith.constant 0 : index
    %40 = vector.load %arg1[%c1, %c0_24, %c0_25] : memref<5x8x96xf32, #tpu.memory_space<vmem>>, vector<1x8x96xf32>
    %41 = vector.shape_cast %40 : vector<1x8x96xf32> to vector<8x96xf32>
    %c0_26 = arith.constant 0 : index
    %c0_27 = arith.constant 0 : index
    %42 = vector.load %arg4[%c0_26, %c0_27] : memref<96x128xf32, #tpu.memory_space<vmem>>, vector<96x128xf32>
    %cst_28 = arith.constant dense<0.000000e+00> : vector<8x128xf32>
    %43 = tpu.matmul %41, %42, %cst_28 {dimension_numbers = #tpu.dot_dimension_numbers<[1], [0], [0], [1], [0, 0, 1, 1], [], []>} : vector<8x96xf32>, vector<96x128xf32>, vector<8x128xf32> -> vector<8x128xf32>
    %c0_29 = arith.constant 0 : index
    %c0_30 = arith.constant 0 : index
    %44 = vector.load %arg5[%c0_29, %c0_30] : memref<32x128xf32, #tpu.memory_space<vmem>>, vector<32x128xf32>
    %cst_31 = arith.constant dense<0.000000e+00> : vector<8x128xf32>
    %45 = tpu.matmul %26, %44, %cst_31 {dimension_numbers = #tpu.dot_dimension_numbers<[1], [0], [0], [1], [0, 0, 1, 1], [], []>} : vector<8x32xf32>, vector<32x128xf32>, vector<8x128xf32> -> vector<8x128xf32>
    %46 = arith.addf %43, %45 : vector<8x128xf32>
    %c0_32 = arith.constant 0 : index
    %c0_33 = arith.constant 0 : index
    %47 = vector.load %arg6[%c0_32, %c0_33] : memref<1x128xf32, #tpu.memory_space<vmem>>, vector<1x128xf32>
    %48 = vector.broadcast %47 : vector<1x128xf32> to vector<8x128xf32>
    %49 = arith.addf %46, %48 : vector<8x128xf32>
    %50 = arith.negf %49 : vector<8x128xf32>
    %51 = math.exp %50 : vector<8x128xf32>
    %cst_34 = arith.constant 1.000000e+00 : f32
    %52 = vector.broadcast %cst_34 : f32 to vector<8x128xf32>
    %53 = arith.addf %52, %51 : vector<8x128xf32>
    %54 = arith.divf %52, %53 : vector<8x128xf32>
    %55 = math.tanh %49 : vector<8x128xf32>
    %56 = vector.extract_strided_slice %54 {offsets = [0, 0], sizes = [8, 32], strides = [1, 1]} : vector<8x128xf32> to vector<8x32xf32>
    %57 = vector.extract_strided_slice %54 {offsets = [0, 32], sizes = [8, 32], strides = [1, 1]} : vector<8x128xf32> to vector<8x32xf32>
    %58 = vector.extract_strided_slice %55 {offsets = [0, 64], sizes = [8, 32], strides = [1, 1]} : vector<8x128xf32> to vector<8x32xf32>
    %59 = vector.extract_strided_slice %54 {offsets = [0, 96], sizes = [8, 32], strides = [1, 1]} : vector<8x128xf32> to vector<8x32xf32>
    %60 = arith.mulf %57, %24 : vector<8x32xf32>
    %61 = arith.mulf %56, %58 : vector<8x32xf32>
    %62 = arith.addf %60, %61 : vector<8x32xf32>
    %63 = math.tanh %62 : vector<8x32xf32>
    %64 = arith.mulf %59, %63 : vector<8x32xf32>
    %c0_35 = arith.constant 0 : index
    %c0_36 = arith.constant 0 : index
    %65 = vector.load %arg7[%c0_35, %c0_36] : memref<32x128xf32, #tpu.memory_space<vmem>>, vector<32x128xf32>
    %cst_37 = arith.constant dense<0.000000e+00> : vector<8x128xf32>
    %66 = tpu.matmul %64, %65, %cst_37 {dimension_numbers = #tpu.dot_dimension_numbers<[1], [0], [0], [1], [0, 0, 1, 1], [], []>} : vector<8x32xf32>, vector<32x128xf32>, vector<8x128xf32> -> vector<8x128xf32>
    %c0_38 = arith.constant 0 : index
    %c0_39 = arith.constant 0 : index
    %67 = vector.load %arg8[%c0_38, %c0_39] : memref<1x128xf32, #tpu.memory_space<vmem>>, vector<1x128xf32>
    %68 = vector.broadcast %67 : vector<1x128xf32> to vector<8x128xf32>
    %69 = arith.addf %66, %68 : vector<8x128xf32>
    %cst_40 = arith.constant 2.000000e-01 : f32
    %70 = vector.broadcast %cst_40 : f32 to vector<8x128xf32>
    %71 = arith.mulf %69, %70 : vector<8x128xf32>
    %72 = math.tanh %71 : vector<8x128xf32>
    %cst_41 = arith.constant 2.500000e+00 : f32
    %73 = vector.broadcast %cst_41 : f32 to vector<8x128xf32>
    %74 = arith.mulf %73, %72 : vector<8x128xf32>
    %c1_42 = arith.constant 1 : index
    %c0_43 = arith.constant 0 : index
    %c0_44 = arith.constant 0 : index
    %75 = vector.load %arg9[%c1_42, %c0_43, %c0_44] : memref<5x8x128xf32, #tpu.memory_space<vmem>>, vector<1x8x128xf32>
    %76 = vector.shape_cast %75 : vector<1x8x128xf32> to vector<8x128xf32>
    %77 = vector.shape_cast %74 : vector<8x128xf32> to vector<1x8x128xf32>
    tpu.vector_store %arg9[%c1_42, %c0_43, %c0_44], %77 {strides = array<i32>} : memref<5x8x128xf32, #tpu.memory_space<vmem>>, vector<1x8x128xf32>,
    %c2 = arith.constant 2 : index
    %c0_45 = arith.constant 0 : index
    %c0_46 = arith.constant 0 : index
    %78 = vector.load %arg1[%c2, %c0_45, %c0_46] : memref<5x8x96xf32, #tpu.memory_space<vmem>>, vector<1x8x96xf32>
    %79 = vector.shape_cast %78 : vector<1x8x96xf32> to vector<8x96xf32>
    %c0_47 = arith.constant 0 : index
    %c0_48 = arith.constant 0 : index
    %80 = vector.load %arg4[%c0_47, %c0_48] : memref<96x128xf32, #tpu.memory_space<vmem>>, vector<96x128xf32>
    %cst_49 = arith.constant dense<0.000000e+00> : vector<8x128xf32>
    %81 = tpu.matmul %79, %80, %cst_49 {dimension_numbers = #tpu.dot_dimension_numbers<[1], [0], [0], [1], [0, 0, 1, 1], [], []>} : vector<8x96xf32>, vector<96x128xf32>, vector<8x128xf32> -> vector<8x128xf32>
    %c0_50 = arith.constant 0 : index
    %c0_51 = arith.constant 0 : index
    %82 = vector.load %arg5[%c0_50, %c0_51] : memref<32x128xf32, #tpu.memory_space<vmem>>, vector<32x128xf32>
    %cst_52 = arith.constant dense<0.000000e+00> : vector<8x128xf32>
    %83 = tpu.matmul %64, %82, %cst_52 {dimension_numbers = #tpu.dot_dimension_numbers<[1], [0], [0], [1], [0, 0, 1, 1], [], []>} : vector<8x32xf32>, vector<32x128xf32>, vector<8x128xf32> -> vector<8x128xf32>
    %84 = arith.addf %81, %83 : vector<8x128xf32>
    %c0_53 = arith.constant 0 : index
    %c0_54 = arith.constant 0 : index
    %85 = vector.load %arg6[%c0_53, %c0_54] : memref<1x128xf32, #tpu.memory_space<vmem>>, vector<1x128xf32>
    %86 = vector.broadcast %85 : vector<1x128xf32> to vector<8x128xf32>
    %87 = arith.addf %84, %86 : vector<8x128xf32>
    %88 = arith.negf %87 : vector<8x128xf32>
    %89 = math.exp %88 : vector<8x128xf32>
    %cst_55 = arith.constant 1.000000e+00 : f32
    %90 = vector.broadcast %cst_55 : f32 to vector<8x128xf32>
    %91 = arith.addf %90, %89 : vector<8x128xf32>
    %92 = arith.divf %90, %91 : vector<8x128xf32>
    %93 = math.tanh %87 : vector<8x128xf32>
    %94 = vector.extract_strided_slice %92 {offsets = [0, 0], sizes = [8, 32], strides = [1, 1]} : vector<8x128xf32> to vector<8x32xf32>
    %95 = vector.extract_strided_slice %92 {offsets = [0, 32], sizes = [8, 32], strides = [1, 1]} : vector<8x128xf32> to vector<8x32xf32>
    %96 = vector.extract_strided_slice %93 {offsets = [0, 64], sizes = [8, 32], strides = [1, 1]} : vector<8x128xf32> to vector<8x32xf32>
    %97 = vector.extract_strided_slice %92 {offsets = [0, 96], sizes = [8, 32], strides = [1, 1]} : vector<8x128xf32> to vector<8x32xf32>
    %98 = arith.mulf %95, %62 : vector<8x32xf32>
    %99 = arith.mulf %94, %96 : vector<8x32xf32>
    %100 = arith.addf %98, %99 : vector<8x32xf32>
    %101 = math.tanh %100 : vector<8x32xf32>
    %102 = arith.mulf %97, %101 : vector<8x32xf32>
    %c0_56 = arith.constant 0 : index
    %c0_57 = arith.constant 0 : index
    %103 = vector.load %arg7[%c0_56, %c0_57] : memref<32x128xf32, #tpu.memory_space<vmem>>, vector<32x128xf32>
    %cst_58 = arith.constant dense<0.000000e+00> : vector<8x128xf32>
    %104 = tpu.matmul %102, %103, %cst_58 {dimension_numbers = #tpu.dot_dimension_numbers<[1], [0], [0], [1], [0, 0, 1, 1], [], []>} : vector<8x32xf32>, vector<32x128xf32>, vector<8x128xf32> -> vector<8x128xf32>
    %c0_59 = arith.constant 0 : index
    %c0_60 = arith.constant 0 : index
    %105 = vector.load %arg8[%c0_59, %c0_60] : memref<1x128xf32, #tpu.memory_space<vmem>>, vector<1x128xf32>
    %106 = vector.broadcast %105 : vector<1x128xf32> to vector<8x128xf32>
    %107 = arith.addf %104, %106 : vector<8x128xf32>
    %cst_61 = arith.constant 2.000000e-01 : f32
    %108 = vector.broadcast %cst_61 : f32 to vector<8x128xf32>
    %109 = arith.mulf %107, %108 : vector<8x128xf32>
    %110 = math.tanh %109 : vector<8x128xf32>
    %cst_62 = arith.constant 2.500000e+00 : f32
    %111 = vector.broadcast %cst_62 : f32 to vector<8x128xf32>
    %112 = arith.mulf %111, %110 : vector<8x128xf32>
    %c2_63 = arith.constant 2 : index
    %c0_64 = arith.constant 0 : index
    %c0_65 = arith.constant 0 : index
    %113 = vector.load %arg9[%c2_63, %c0_64, %c0_65] : memref<5x8x128xf32, #tpu.memory_space<vmem>>, vector<1x8x128xf32>
    %114 = vector.shape_cast %113 : vector<1x8x128xf32> to vector<8x128xf32>
    %115 = vector.shape_cast %112 : vector<8x128xf32> to vector<1x8x128xf32>
    tpu.vector_store %arg9[%c2_63, %c0_64, %c0_65], %115 {strides = array<i32>} : memref<5x8x128xf32, #tpu.memory_space<vmem>>, vector<1x8x128xf32>,
    %c3 = arith.constant 3 : index
    %c0_66 = arith.constant 0 : index
    %c0_67 = arith.constant 0 : index
    %116 = vector.load %arg1[%c3, %c0_66, %c0_67] : memref<5x8x96xf32, #tpu.memory_space<vmem>>, vector<1x8x96xf32>
    %117 = vector.shape_cast %116 : vector<1x8x96xf32> to vector<8x96xf32>
    %c0_68 = arith.constant 0 : index
    %c0_69 = arith.constant 0 : index
    %118 = vector.load %arg4[%c0_68, %c0_69] : memref<96x128xf32, #tpu.memory_space<vmem>>, vector<96x128xf32>
    %cst_70 = arith.constant dense<0.000000e+00> : vector<8x128xf32>
    %119 = tpu.matmul %117, %118, %cst_70 {dimension_numbers = #tpu.dot_dimension_numbers<[1], [0], [0], [1], [0, 0, 1, 1], [], []>} : vector<8x96xf32>, vector<96x128xf32>, vector<8x128xf32> -> vector<8x128xf32>
    %c0_71 = arith.constant 0 : index
    %c0_72 = arith.constant 0 : index
    %120 = vector.load %arg5[%c0_71, %c0_72] : memref<32x128xf32, #tpu.memory_space<vmem>>, vector<32x128xf32>
    %cst_73 = arith.constant dense<0.000000e+00> : vector<8x128xf32>
    %121 = tpu.matmul %102, %120, %cst_73 {dimension_numbers = #tpu.dot_dimension_numbers<[1], [0], [0], [1], [0, 0, 1, 1], [], []>} : vector<8x32xf32>, vector<32x128xf32>, vector<8x128xf32> -> vector<8x128xf32>
    %122 = arith.addf %119, %121 : vector<8x128xf32>
    %c0_74 = arith.constant 0 : index
    %c0_75 = arith.constant 0 : index
    %123 = vector.load %arg6[%c0_74, %c0_75] : memref<1x128xf32, #tpu.memory_space<vmem>>, vector<1x128xf32>
    %124 = vector.broadcast %123 : vector<1x128xf32> to vector<8x128xf32>
    %125 = arith.addf %122, %124 : vector<8x128xf32>
    %126 = arith.negf %125 : vector<8x128xf32>
    %127 = math.exp %126 : vector<8x128xf32>
    %cst_76 = arith.constant 1.000000e+00 : f32
    %128 = vector.broadcast %cst_76 : f32 to vector<8x128xf32>
    %129 = arith.addf %128, %127 : vector<8x128xf32>
    %130 = arith.divf %128, %129 : vector<8x128xf32>
    %131 = math.tanh %125 : vector<8x128xf32>
    %132 = vector.extract_strided_slice %130 {offsets = [0, 0], sizes = [8, 32], strides = [1, 1]} : vector<8x128xf32> to vector<8x32xf32>
    %133 = vector.extract_strided_slice %130 {offsets = [0, 32], sizes = [8, 32], strides = [1, 1]} : vector<8x128xf32> to vector<8x32xf32>
    %134 = vector.extract_strided_slice %131 {offsets = [0, 64], sizes = [8, 32], strides = [1, 1]} : vector<8x128xf32> to vector<8x32xf32>
    %135 = vector.extract_strided_slice %130 {offsets = [0, 96], sizes = [8, 32], strides = [1, 1]} : vector<8x128xf32> to vector<8x32xf32>
    %136 = arith.mulf %133, %100 : vector<8x32xf32>
    %137 = arith.mulf %132, %134 : vector<8x32xf32>
    %138 = arith.addf %136, %137 : vector<8x32xf32>
    %139 = math.tanh %138 : vector<8x32xf32>
    %140 = arith.mulf %135, %139 : vector<8x32xf32>
    %c0_77 = arith.constant 0 : index
    %c0_78 = arith.constant 0 : index
    %141 = vector.load %arg7[%c0_77, %c0_78] : memref<32x128xf32, #tpu.memory_space<vmem>>, vector<32x128xf32>
    %cst_79 = arith.constant dense<0.000000e+00> : vector<8x128xf32>
    %142 = tpu.matmul %140, %141, %cst_79 {dimension_numbers = #tpu.dot_dimension_numbers<[1], [0], [0], [1], [0, 0, 1, 1], [], []>} : vector<8x32xf32>, vector<32x128xf32>, vector<8x128xf32> -> vector<8x128xf32>
    %c0_80 = arith.constant 0 : index
    %c0_81 = arith.constant 0 : index
    %143 = vector.load %arg8[%c0_80, %c0_81] : memref<1x128xf32, #tpu.memory_space<vmem>>, vector<1x128xf32>
    %144 = vector.broadcast %143 : vector<1x128xf32> to vector<8x128xf32>
    %145 = arith.addf %142, %144 : vector<8x128xf32>
    %cst_82 = arith.constant 2.000000e-01 : f32
    %146 = vector.broadcast %cst_82 : f32 to vector<8x128xf32>
    %147 = arith.mulf %145, %146 : vector<8x128xf32>
    %148 = math.tanh %147 : vector<8x128xf32>
    %cst_83 = arith.constant 2.500000e+00 : f32
    %149 = vector.broadcast %cst_83 : f32 to vector<8x128xf32>
    %150 = arith.mulf %149, %148 : vector<8x128xf32>
    %c3_84 = arith.constant 3 : index
    %c0_85 = arith.constant 0 : index
    %c0_86 = arith.constant 0 : index
    %151 = vector.load %arg9[%c3_84, %c0_85, %c0_86] : memref<5x8x128xf32, #tpu.memory_space<vmem>>, vector<1x8x128xf32>
    %152 = vector.shape_cast %151 : vector<1x8x128xf32> to vector<8x128xf32>
    %153 = vector.shape_cast %150 : vector<8x128xf32> to vector<1x8x128xf32>
    tpu.vector_store %arg9[%c3_84, %c0_85, %c0_86], %153 {strides = array<i32>} : memref<5x8x128xf32, #tpu.memory_space<vmem>>, vector<1x8x128xf32>,
    %c4 = arith.constant 4 : index
    %c0_87 = arith.constant 0 : index
    %c0_88 = arith.constant 0 : index
    %154 = vector.load %arg1[%c4, %c0_87, %c0_88] : memref<5x8x96xf32, #tpu.memory_space<vmem>>, vector<1x8x96xf32>
    %155 = vector.shape_cast %154 : vector<1x8x96xf32> to vector<8x96xf32>
    %c0_89 = arith.constant 0 : index
    %c0_90 = arith.constant 0 : index
    %156 = vector.load %arg4[%c0_89, %c0_90] : memref<96x128xf32, #tpu.memory_space<vmem>>, vector<96x128xf32>
    %cst_91 = arith.constant dense<0.000000e+00> : vector<8x128xf32>
    %157 = tpu.matmul %155, %156, %cst_91 {dimension_numbers = #tpu.dot_dimension_numbers<[1], [0], [0], [1], [0, 0, 1, 1], [], []>} : vector<8x96xf32>, vector<96x128xf32>, vector<8x128xf32> -> vector<8x128xf32>
    %c0_92 = arith.constant 0 : index
    %c0_93 = arith.constant 0 : index
    %158 = vector.load %arg5[%c0_92, %c0_93] : memref<32x128xf32, #tpu.memory_space<vmem>>, vector<32x128xf32>
    %cst_94 = arith.constant dense<0.000000e+00> : vector<8x128xf32>
    %159 = tpu.matmul %140, %158, %cst_94 {dimension_numbers = #tpu.dot_dimension_numbers<[1], [0], [0], [1], [0, 0, 1, 1], [], []>} : vector<8x32xf32>, vector<32x128xf32>, vector<8x128xf32> -> vector<8x128xf32>
    %160 = arith.addf %157, %159 : vector<8x128xf32>
    %c0_95 = arith.constant 0 : index
    %c0_96 = arith.constant 0 : index
    %161 = vector.load %arg6[%c0_95, %c0_96] : memref<1x128xf32, #tpu.memory_space<vmem>>, vector<1x128xf32>
    %162 = vector.broadcast %161 : vector<1x128xf32> to vector<8x128xf32>
    %163 = arith.addf %160, %162 : vector<8x128xf32>
    %164 = arith.negf %163 : vector<8x128xf32>
    %165 = math.exp %164 : vector<8x128xf32>
    %cst_97 = arith.constant 1.000000e+00 : f32
    %166 = vector.broadcast %cst_97 : f32 to vector<8x128xf32>
    %167 = arith.addf %166, %165 : vector<8x128xf32>
    %168 = arith.divf %166, %167 : vector<8x128xf32>
    %169 = math.tanh %163 : vector<8x128xf32>
    %170 = vector.extract_strided_slice %168 {offsets = [0, 0], sizes = [8, 32], strides = [1, 1]} : vector<8x128xf32> to vector<8x32xf32>
    %171 = vector.extract_strided_slice %168 {offsets = [0, 32], sizes = [8, 32], strides = [1, 1]} : vector<8x128xf32> to vector<8x32xf32>
    %172 = vector.extract_strided_slice %169 {offsets = [0, 64], sizes = [8, 32], strides = [1, 1]} : vector<8x128xf32> to vector<8x32xf32>
    %173 = vector.extract_strided_slice %168 {offsets = [0, 96], sizes = [8, 32], strides = [1, 1]} : vector<8x128xf32> to vector<8x32xf32>
    %174 = arith.mulf %171, %138 : vector<8x32xf32>
    %175 = arith.mulf %170, %172 : vector<8x32xf32>
    %176 = arith.addf %174, %175 : vector<8x32xf32>
    %177 = math.tanh %176 : vector<8x32xf32>
    %178 = arith.mulf %173, %177 : vector<8x32xf32>
    %c0_98 = arith.constant 0 : index
    %c0_99 = arith.constant 0 : index
    %179 = vector.load %arg7[%c0_98, %c0_99] : memref<32x128xf32, #tpu.memory_space<vmem>>, vector<32x128xf32>
    %cst_100 = arith.constant dense<0.000000e+00> : vector<8x128xf32>
    %180 = tpu.matmul %178, %179, %cst_100 {dimension_numbers = #tpu.dot_dimension_numbers<[1], [0], [0], [1], [0, 0, 1, 1], [], []>} : vector<8x32xf32>, vector<32x128xf32>, vector<8x128xf32> -> vector<8x128xf32>
    %c0_101 = arith.constant 0 : index
    %c0_102 = arith.constant 0 : index
    %181 = vector.load %arg8[%c0_101, %c0_102] : memref<1x128xf32, #tpu.memory_space<vmem>>, vector<1x128xf32>
    %182 = vector.broadcast %181 : vector<1x128xf32> to vector<8x128xf32>
    %183 = arith.addf %180, %182 : vector<8x128xf32>
    %cst_103 = arith.constant 2.000000e-01 : f32
    %184 = vector.broadcast %cst_103 : f32 to vector<8x128xf32>
    %185 = arith.mulf %183, %184 : vector<8x128xf32>
    %186 = math.tanh %185 : vector<8x128xf32>
    %cst_104 = arith.constant 2.500000e+00 : f32
    %187 = vector.broadcast %cst_104 : f32 to vector<8x128xf32>
    %188 = arith.mulf %187, %186 : vector<8x128xf32>
    %c4_105 = arith.constant 4 : index
    %c0_106 = arith.constant 0 : index
    %c0_107 = arith.constant 0 : index
    %189 = vector.load %arg9[%c4_105, %c0_106, %c0_107] : memref<5x8x128xf32, #tpu.memory_space<vmem>>, vector<1x8x128xf32>
    %190 = vector.shape_cast %189 : vector<1x8x128xf32> to vector<8x128xf32>
    %191 = vector.shape_cast %188 : vector<8x128xf32> to vector<1x8x128xf32>
    tpu.vector_store %arg9[%c4_105, %c0_106, %c0_107], %191 {strides = array<i32>} : memref<5x8x128xf32, #tpu.memory_space<vmem>>, vector<1x8x128xf32>,
    %c0_108 = arith.constant 0 : index
    %c0_109 = arith.constant 0 : index
    %192 = vector.load %arg10[%c0_108, %c0_109] : memref<8x64xf32, #tpu.memory_space<vmem>>, vector<8x32xf32>
    tpu.vector_store %arg10[%c0_108, %c0_109], %178 {strides = array<i32>} : memref<8x64xf32, #tpu.memory_space<vmem>>, vector<8x32xf32>,
    %c0_110 = arith.constant 0 : index
    %c32 = arith.constant 32 : index
    %193 = vector.load %arg10[%c0_110, %c32] : memref<8x64xf32, #tpu.memory_space<vmem>>, vector<8x32xf32>
    tpu.vector_store %arg10[%c0_110, %c32], %176 {strides = array<i32>} : memref<8x64xf32, #tpu.memory_space<vmem>>, vector<8x32xf32>,
    return
  }
  func.func @transform_0(%arg0: i32) -> (i32, i32, i32) {
    %c0_i32 = arith.constant 0 : i32
    %c0_i32_0 = arith.constant 0 : i32
    %c0_i32_1 = arith.constant 0 : i32
    return %arg0, %c0_i32, %c0_i32_0 : i32, i32, i32
  }
  func.func @transform_1(%arg0: i32) -> (i32, i32) {
    %c0_i32 = arith.constant 0 : i32
    %c0_i32_0 = arith.constant 0 : i32
    %c0_i32_1 = arith.constant 0 : i32
    return %c0_i32, %c0_i32_0 : i32, i32
  }
  func.func @transform_2(%arg0: i32) -> (i32, i32) {
    %c0_i32 = arith.constant 0 : i32
    %c0_i32_0 = arith.constant 0 : i32
    %c0_i32_1 = arith.constant 0 : i32
    return %c0_i32, %c0_i32_0 : i32, i32
  }
  func.func @transform_3(%arg0: i32) -> (i32, i32) {
    %c0_i32 = arith.constant 0 : i32
    %c0_i32_0 = arith.constant 0 : i32
    %c0_i32_1 = arith.constant 0 : i32
    return %c0_i32, %c0_i32_0 : i32, i32
  }
  func.func @transform_4(%arg0: i32) -> (i32, i32) {
    %c0_i32 = arith.constant 0 : i32
    %c0_i32_0 = arith.constant 0 : i32
    %c0_i32_1 = arith.constant 0 : i32
    return %c0_i32, %c0_i32_0 : i32, i32
  }
  func.func @transform_5(%arg0: i32) -> (i32, i32) {
    %c0_i32 = arith.constant 0 : i32
    %c0_i32_0 = arith.constant 0 : i32
    %c0_i32_1 = arith.constant 0 : i32
    return %c0_i32, %c0_i32_0 : i32, i32
  }
  func.func @transform_6(%arg0: i32) -> (i32, i32) {
    %c0_i32 = arith.constant 0 : i32
    %c0_i32_0 = arith.constant 0 : i32
    %c0_i32_1 = arith.constant 0 : i32
    return %c0_i32, %c0_i32_0 : i32, i32
  }
  func.func @transform_7(%arg0: i32) -> (i32, i32) {
    %c0_i32 = arith.constant 0 : i32
    %c0_i32_0 = arith.constant 0 : i32
    %c0_i32_1 = arith.constant 0 : i32
    return %c0_i32, %c0_i32_0 : i32, i32
  }
  func.func @transform_8(%arg0: i32) -> (i32, i32, i32) {
    %c0_i32 = arith.constant 0 : i32
    %c0_i32_0 = arith.constant 0 : i32
    %c0_i32_1 = arith.constant 0 : i32
    return %arg0, %c0_i32, %c0_i32_0 : i32, i32, i32
  }
  func.func @transform_9(%arg0: i32) -> (i32, i32) {
    %c0_i32 = arith.constant 0 : i32
    %c0_i32_0 = arith.constant 0 : i32
    %c0_i32_1 = arith.constant 0 : i32
    return %c0_i32, %c0_i32_0 : i32, i32
  }
}

</mosaic_0001>

<llo_original>
// kernel: tpu_custom_call.1
$region0: #{tpu_custom_call.1}
  #allocation0 [shape = 'u32[]', space=smem, size = 0x4, offset = 0x4, fixed_abs, tag = 'smem constant byte address 0x4 - core index']
  #allocation1 [shape = 'u32[144,128]{1,0:T(1,128)}', space=vmem, size = 0x12000, scoped, tag = 'internal scratch']
  #allocation2 [shape = 'f32[8,64]{1,0:T(8,128)}', space=vmem, size = 0x1000, scoped, tag = 'scratch operand']
  %s0 = inlined_call_operand.hbm [shape: f32[5,8,96], index: 0, kind: input, shape index: {}]
  %s1 = inlined_call_operand.hbm [shape: f32[8,32], index: 1, kind: input, shape index: {}]
  %s2 = inlined_call_operand.hbm [shape: f32[8,32], index: 2, kind: input, shape index: {}]
  %s3 = inlined_call_operand.hbm [shape: f32[96,128], index: 3, kind: input, shape index: {}]
  %s4 = inlined_call_operand.hbm [shape: f32[32,128], index: 4, kind: input, shape index: {}]
  %s5 = inlined_call_operand.vmem [shape: f32[1,128], index: 5, kind: input, shape index: {}]
  %s6 = inlined_call_operand.hbm [shape: f32[32,128], index: 6, kind: input, shape index: {}]
  %s7 = inlined_call_operand.vmem [shape: f32[1,128], index: 7, kind: input, shape index: {}]
  %s8 = inlined_call_operand.hbm [shape: f32[5,8,128], index: 8, kind: output, shape index: {0}]
  %s9 = inlined_call_operand.hbm [shape: f32[8,64], index: 9, kind: output, shape index: {1}]
  %10 = xla_tuple %s8, %s9
  %s11 = sld [smem:[#allocation0]]
  $region74: #{tpu_custom_call.1} parent=0
    _
  %s13 = ssub.s32 1, %s11
  %s14 = scalar_select 0, %s13, %s11
  $region1: #{tpu_custom_call.1} parent=0
    #allocation3 [shape = 'u8[20480]{0}', space=vmem, size = 0x5000, scoped, tag = 'input window, operand 0, single buffered']
    #allocation4 [shape = 's32[1]{0}', space=sflag, size = 0x4, scoped, tag = 'scoped memory for tpu_custom_call.1']
    #allocation5 [shape = 's32[1]{0}', space=sflag, size = 0x4, scoped, tag = 'scoped memory for tpu_custom_call.1']
    #allocation6 [shape = 'u8[4096]{0}', space=vmem, size = 0x1000, scoped, tag = 'input window, operand 1, single buffered']
    #allocation7 [shape = 's32[1]{0}', space=sflag, size = 0x4, scoped, tag = 'scoped memory for tpu_custom_call.1']
    #allocation8 [shape = 'u8[4096]{0}', space=vmem, size = 0x1000, scoped, tag = 'input window, operand 2, single buffered']
    #allocation9 [shape = 'u8[49152]{0}', space=vmem, size = 0xc000, scoped, tag = 'input window, operand 3, single buffered']
    #allocation10 [shape = 's32[1]{0}', space=sflag, size = 0x4, scoped, tag = 'scoped memory for tpu_custom_call.1']
    #allocation11 [shape = 'u8[16384]{0}', space=vmem, size = 0x4000, scoped, tag = 'input window, operand 4, single buffered']
    #allocation12 [shape = 'u8[16384]{0}', space=vmem, size = 0x4000, scoped, tag = 'input window, operand 6, single buffered']
    #allocation13 [shape = 's32[1]{0}', space=sflag, size = 0x4, scoped, tag = 'scoped memory for tpu_custom_call.1']
    #allocation14 [shape = 'u8[20480]{0}', space=vmem, size = 0x5000, scoped, tag = 'output window, operand 0, single buffered']
    #allocation15 [shape = 'u8[4096]{0}', space=vmem, size = 0x1000, scoped, tag = 'output window, operand 1, single buffered']
    #allocation16 [shape = 's32[1]{0}', space=sflag, size = 0x4, scoped, tag = 'scoped memory for tpu_custom_call.1']
    %15 = vsyncpa [#allocation4], 0
    %16 = vsyncpa [#allocation7], 0
    %17 = vsyncpa [#allocation10], 0
    %18 = vsyncpa [#allocation13], 0
    %19 = vsyncpa [#allocation5], 0
    %20 = vsyncpa [#allocation16], 0
    // Predicated region
    $region2: #{tpu_custom_call.1} parent=1 // pred_check
      _
    $region3: #{tpu_custom_call.1} parent=1 // pred_check_branch
      %22 = sbr.rel (0) target = $region5
    $region4: #{tpu_custom_call.1} parent=1 // pred_region
      %s24 = ssub.s32 640, 640
      %25 = vsyncadd [#allocation4], %s24
      %s26 = sshll.u32 [#allocation3], 4
      %s27 = int_to_ptr.vmem [resolvable:$true] %s26
      %32 = dma.hbm_to_vmem [thread:$0]  %s0, 640, %s27, [#allocation4], 128, 128, 8
    $region5: #{tpu_custom_call.1} parent=1 // pred_fallthru
      _
    // Predicated region
    $region6: #{tpu_custom_call.1} parent=1 // pred_check
      _
    $region7: #{tpu_custom_call.1} parent=1 // pred_check_branch
      %34 = sbr.rel (0) target = $region9
    $region8: #{tpu_custom_call.1} parent=1 // pred_region
      %s36 = ssub.s32 128, 128
      %37 = vsyncadd [#allocation7], %s36
      %s39 = sshll.u32 [#allocation6], 4
      %s40 = int_to_ptr.vmem [resolvable:$true] %s39
      %42 = dma.hbm_to_vmem [thread:$0]  %s1, 128, %s40, [#allocation7]
    $region9: #{tpu_custom_call.1} parent=1 // pred_fallthru
      _
    // Predicated region
    $region10: #{tpu_custom_call.1} parent=1 // pred_check
      _
    $region11: #{tpu_custom_call.1} parent=1 // pred_check_branch
      %44 = sbr.rel (0) target = $region13
    $region12: #{tpu_custom_call.1} parent=1 // pred_region
      %s46 = ssub.s32 128, 128
      %47 = vsyncadd [#allocation7], %s46
      %s49 = sshll.u32 [#allocation8], 4
      %s50 = int_to_ptr.vmem [resolvable:$true] %s49
      %52 = dma.hbm_to_vmem [thread:$0]  %s2, 128, %s50, [#allocation7]
    $region13: #{tpu_custom_call.1} parent=1 // pred_fallthru
      _
    // Predicated region
    $region14: #{tpu_custom_call.1} parent=1 // pred_check
      _
    $region15: #{tpu_custom_call.1} parent=1 // pred_check_branch
      %54 = sbr.rel (0) target = $region17
    $region16: #{tpu_custom_call.1} parent=1 // pred_region
      %s56 = ssub.s32 1536, 1536
      %57 = vsyncadd [#allocation10], %s56
      %s58 = sshll.u32 [#allocation9], 4
      %s59 = int_to_ptr.vmem [resolvable:$true] %s58
      %64 = dma.hbm_to_vmem [thread:$0]  %s3, 1536, %s59, [#allocation10], 128, 128, 8
    $region17: #{tpu_custom_call.1} parent=1 // pred_fallthru
      _
    // Predicated region
    $region18: #{tpu_custom_call.1} parent=1 // pred_check
      _
    $region19: #{tpu_custom_call.1} parent=1 // pred_check_branch
      %66 = sbr.rel (0) target = $region21
    $region20: #{tpu_custom_call.1} parent=1 // pred_region
      %s68 = ssub.s32 512, 512
      %69 = vsyncadd [#allocation10], %s68
      %s70 = sshll.u32 [#allocation11], 4
      %s71 = int_to_ptr.vmem [resolvable:$true] %s70
      %76 = dma.hbm_to_vmem [thread:$0]  %s4, 512, %s71, [#allocation10], 128, 128, 8
    $region21: #{tpu_custom_call.1} parent=1 // pred_fallthru
      _
    // Predicated region
    $region22: #{tpu_custom_call.1} parent=1 // pred_check
      _
    $region23: #{tpu_custom_call.1} parent=1 // pred_check_branch
      %78 = sbr.rel (0) target = $region25
    $region24: #{tpu_custom_call.1} parent=1 // pred_region
      _
    $region25: #{tpu_custom_call.1} parent=1 // pred_fallthru
      _
    // Predicated region
    $region26: #{tpu_custom_call.1} parent=1 // pred_check
      _
    $region27: #{tpu_custom_call.1} parent=1 // pred_check_branch
      %80 = sbr.rel (0) target = $region29
    $region28: #{tpu_custom_call.1} parent=1 // pred_region
      %s82 = ssub.s32 512, 512
      %83 = vsyncadd [#allocation13], %s82
      %s84 = sshll.u32 [#allocation12], 4
      %s85 = int_to_ptr.vmem [resolvable:$true] %s84
      %90 = dma.hbm_to_vmem [thread:$0]  %s6, 512, %s85, [#allocation13], 128, 128, 8
    $region29: #{tpu_custom_call.1} parent=1 // pred_fallthru
      _
    // Predicated region
    $region30: #{tpu_custom_call.1} parent=1 // pred_check
      _
    $region31: #{tpu_custom_call.1} parent=1 // pred_check_branch
      %92 = sbr.rel (0) target = $region33
    $region32: #{tpu_custom_call.1} parent=1 // pred_region
      _
    $region33: #{tpu_custom_call.1} parent=1 // pred_fallthru
      _
    // Predicated region
    $region34: #{tpu_custom_call.1} parent=1 // pred_check
      _
    $region35: #{tpu_custom_call.1} parent=1 // pred_check_branch
      %94 = sbr.rel (0) target = $region37
    $region36: #{tpu_custom_call.1} parent=1 // pred_region
      %95 = dma.done [#allocation4], 640
    $region37: #{tpu_custom_call.1} parent=1 // pred_fallthru
      _
    // Predicated region
    $region38: #{tpu_custom_call.1} parent=1 // pred_check
      _
    $region39: #{tpu_custom_call.1} parent=1 // pred_check_branch
      %97 = sbr.rel (0) target = $region41
    $region40: #{tpu_custom_call.1} parent=1 // pred_region
      %98 = dma.done [#allocation7], 128
    $region41: #{tpu_custom_call.1} parent=1 // pred_fallthru
      _
    // Predicated region
    $region42: #{tpu_custom_call.1} parent=1 // pred_check
      _
    $region43: #{tpu_custom_call.1} parent=1 // pred_check_branch
      %100 = sbr.rel (0) target = $region45
    $region44: #{tpu_custom_call.1} parent=1 // pred_region
      %101 = dma.done [#allocation7], 128
    $region45: #{tpu_custom_call.1} parent=1 // pred_fallthru
      _
    // Predicated region
    $region46: #{tpu_custom_call.1} parent=1 // pred_check
      _
    $region47: #{tpu_custom_call.1} parent=1 // pred_check_branch
      %103 = sbr.rel (0) target = $region49
    $region48: #{tpu_custom_call.1} parent=1 // pred_region
      %104 = dma.done [#allocation10], 1536
    $region49: #{tpu_custom_call.1} parent=1 // pred_fallthru
      _
    // Predicated region
    $region50: #{tpu_custom_call.1} parent=1 // pred_check
      _
    $region51: #{tpu_custom_call.1} parent=1 // pred_check_branch
      %106 = sbr.rel (0) target = $region53
    $region52: #{tpu_custom_call.1} parent=1 // pred_region
      %107 = dma.done [#allocation10], 512
    $region53: #{tpu_custom_call.1} parent=1 // pred_fallthru
      _
    // Predicated region
    $region54: #{tpu_custom_call.1} parent=1 // pred_check
      _
    $region55: #{tpu_custom_call.1} parent=1 // pred_check_branch
      %109 = sbr.rel (0) target = $region57
    $region56: #{tpu_custom_call.1} parent=1 // pred_region
      %110 = dma.done [#allocation13], 512
    $region57: #{tpu_custom_call.1} parent=1 // pred_fallthru
      _
    %v111 = vld [vmem:[#allocation6] sm:$0xff]
    %v112 = vld [vmem:[#allocation8] sm:$0xff]
    %v113 = vld [vmem:[#allocation3] sm:$0xff]
    %v114 = vld [vmem:[#allocation9] sm:$0xff]
    %v115 = vld [vmem:[#allocation9 + $0x8] sm:$0xff]
    %v116 = vld [vmem:[#allocation9 + $0x10] sm:$0xff]
    %v117 = vld [vmem:[#allocation9 + $0x18] sm:$0xff]
    %v118 = vld [vmem:[#allocation9 + $0x20] sm:$0xff]
    %v119 = vld [vmem:[#allocation9 + $0x28] sm:$0xff]
    %v120 = vld [vmem:[#allocation9 + $0x30] sm:$0xff]
    %v121 = vld [vmem:[#allocation9 + $0x38] sm:$0xff]
    %v122 = vld [vmem:[#allocation9 + $0x40] sm:$0xff]
    %v123 = vld [vmem:[#allocation9 + $0x48] sm:$0xff]
    %v124 = vld [vmem:[#allocation9 + $0x50] sm:$0xff]
    %v125 = vld [vmem:[#allocation9 + $0x58] sm:$0xff]
    %v126 = vld [vmem:[#allocation11] sm:$0xff]
    %v127 = vld [vmem:[#allocation11 + $0x8] sm:$0xff]
    %v128 = vld [vmem:[#allocation11 + $0x10] sm:$0xff]
    %v129 = vld [vmem:[#allocation11 + $0x18] sm:$0xff]
    %vm130 = vcmask 261120
    %v132 = vsel %vm130, %v111, 0
    %134 = vmatprep.subr.mxu0 0.0
    %135 = vmatpush1.msra.mxu0 %v126
    %136 = vmatprep.subr.mxu0 0.0
    %137 = vmatpush1.msra.mxu0 %v127
    %138 = vmatprep.subr.mxu0 0.0
    %139 = vmatpush1.msra.mxu0 %v128
    %140 = vmatprep.subr.mxu0 0.0
    %141 = vmatpush1.msra.mxu0 %v129
    %142 = vmatprep.subr.mxu0 0.0
    %143 = vmatpush1.msra.mxu0 0.0
    %144 = vmatprep.subr.mxu0 0.0
    %145 = vmatpush1.msra.mxu0 0.0
    %146 = vmatprep.subr.mxu0 0.0
    %147 = vmatpush1.msra.mxu0 0.0
    %148 = vmatprep.subr.mxu0 0.0
    %149 = vmatpush1.msra.mxu0 0.0
    %150 = vmatprep.subr.mxu0 0.0
    %151 = vmatpush1.msra.mxu0 0.0
    %152 = vmatprep.subr.mxu0 0.0
    %153 = vmatpush1.msra.mxu0 0.0
    %154 = vmatprep.subr.mxu0 0.0
    %155 = vmatpush1.msra.mxu0 0.0
    %156 = vmatprep.subr.mxu0 0.0
    %157 = vmatpush1.msra.mxu0 0.0
    %158 = vmatprep.subr.mxu0 0.0
    %159 = vmatpush1.msra.mxu0 0.0
    %160 = vmatprep.subr.mxu0 0.0
    %161 = vmatpush1.msra.mxu0 0.0
    %162 = vmatprep.subr.mxu0 0.0
    %163 = vmatpush1.msra.mxu0 0.0
    %164 = vmatprep.subr.mxu0 0.0
    %165 = vmatpush1.msra.mxu0 0.0
    %166 = vmatprep.subr.mxu0 0.0
    %167 = vmatpush1.msra.mxu0 0.0
    %168 = vmatprep.subr.mxu0 0.0
    %169 = vmatpush1.msra.mxu0 0.0
    %170 = vmatprep.subr.mxu0 0.0
    %171 = vmatpush1.msra.mxu0 0.0
    %172 = vmatprep.subr.mxu0 0.0
    %173 = vmatpush1.msra.mxu0 0.0
    %174 = vmatprep.subr.mxu0 0.0
    %175 = vmatpush1.msra.mxu0 0.0
    %176 = vmatprep.subr.mxu0 0.0
    %177 = vmatpush1.msra.mxu0 0.0
    %178 = vmatprep.subr.mxu0 0.0
    %179 = vmatpush1.msra.mxu0 0.0
    %180 = vmatprep.subr.mxu0 0.0
    %181 = vmatpush1.msra.mxu0 0.0
    %182 = vmatprep.subr.mxu0 0.0
    %183 = vmatpush1.msra.mxu0 0.0
    %184 = vmatprep.subr.mxu0 0.0
    %185 = vmatpush1.msra.mxu0 0.0
    %186 = vmatprep.subr.mxu0 0.0
    %187 = vmatpush1.msra.mxu0 0.0
    %188 = vmatprep.subr.mxu0 0.0
    %189 = vmatpush1.msra.mxu0 0.0
    %190 = vmatprep.subr.mxu0 0.0
    %191 = vmatpush1.msra.mxu0 0.0
    %192 = vmatprep.subr.mxu0 0.0
    %193 = vmatpush1.msra.mxu0 0.0
    %194 = vmatprep.subr.mxu0 0.0
    %195 = vmatpush1.msra.mxu0 0.0
    %196 = vmatprep.subr.mxu0 0.0
    %197 = vmatpush1.msra.mxu0 0.0
    %198 = vmatprep.mubr.f32.mxu0 0.0
    %199 = vmatmul.mubr.f32.gmra.mrb[0].mxu0 %v132
    %v200 = vpop.f32.mrb[0].mxu0
    %v201 = vadd.f32 0.0, %v200
    %v202 = vpop.f32.mrb[0].mxu0
    %203 = vdwg.mxu0
    %vm204 = vcmask 785408
    %v206 = vsel %vm204, %v113, 0
    %208 = vmatprep.subr.mxu0 0.0
    %209 = vmatpush1.msra.mxu0 %v114
    %210 = vmatprep.subr.mxu0 0.0
    %211 = vmatpush1.msra.mxu0 %v115
    %212 = vmatprep.subr.mxu0 0.0
    %213 = vmatpush1.msra.mxu0 %v116
    %214 = vmatprep.subr.mxu0 0.0
    %215 = vmatpush1.msra.mxu0 %v117
    %216 = vmatprep.subr.mxu0 0.0
    %217 = vmatpush1.msra.mxu0 %v118
    %218 = vmatprep.subr.mxu0 0.0
    %219 = vmatpush1.msra.mxu0 %v119
    %220 = vmatprep.subr.mxu0 0.0
    %221 = vmatpush1.msra.mxu0 %v120
    %222 = vmatprep.subr.mxu0 0.0
    %223 = vmatpush1.msra.mxu0 %v121
    %224 = vmatprep.subr.mxu0 0.0
    %225 = vmatpush1.msra.mxu0 %v122
    %226 = vmatprep.subr.mxu0 0.0
    %227 = vmatpush1.msra.mxu0 %v123
    %228 = vmatprep.subr.mxu0 0.0
    %229 = vmatpush1.msra.mxu0 %v124
    %230 = vmatprep.subr.mxu0 0.0
    %231 = vmatpush1.msra.mxu0 %v125
    %232 = vmatprep.subr.mxu0 0.0
    %233 = vmatpush1.msra.mxu0 0.0
    %234 = vmatprep.subr.mxu0 0.0
    %235 = vmatpush1.msra.mxu0 0.0
    %236 = vmatprep.subr.mxu0 0.0
    %237 = vmatpush1.msra.mxu0 0.0
    %238 = vmatprep.subr.mxu0 0.0
    %239 = vmatpush1.msra.mxu0 0.0
    %240 = vmatprep.subr.mxu0 0.0
    %241 = vmatpush1.msra.mxu0 0.0
    %242 = vmatprep.subr.mxu0 0.0
    %243 = vmatpush1.msra.mxu0 0.0
    %244 = vmatprep.subr.mxu0 0.0
    %245 = vmatpush1.msra.mxu0 0.0
    %246 = vmatprep.subr.mxu0 0.0
    %247 = vmatpush1.msra.mxu0 0.0
    %248 = vmatprep.subr.mxu0 0.0
    %249 = vmatpush1.msra.mxu0 0.0
    %250 = vmatprep.subr.mxu0 0.0
    %251 = vmatpush1.msra.mxu0 0.0
    %252 = vmatprep.subr.mxu0 0.0
    %253 = vmatpush1.msra.mxu0 0.0
    %254 = vmatprep.subr.mxu0 0.0
    %255 = vmatpush1.msra.mxu0 0.0
    %256 = vmatprep.subr.mxu0 0.0
    %257 = vmatpush1.msra.mxu0 0.0
    %258 = vmatprep.subr.mxu0 0.0
    %259 = vmatpush1.msra.mxu0 0.0
    %260 = vmatprep.subr.mxu0 0.0
    %261 = vmatpush1.msra.mxu0 0.0
    %262 = vmatprep.subr.mxu0 0.0
    %263 = vmatpush1.msra.mxu0 0.0
    %264 = vmatprep.subr.mxu0 0.0
    %265 = vmatpush1.msra.mxu0 0.0
    %266 = vmatprep.subr.mxu0 0.0
    %267 = vmatpush1.msra.mxu0 0.0
    %268 = vmatprep.subr.mxu0 0.0
    %269 = vmatpush1.msra.mxu0 0.0
    %270 = vmatprep.subr.mxu0 0.0
    %271 = vmatpush1.msra.mxu0 0.0
    %272 = vmatprep.mubr.f32.mxu0 0.0
    %273 = vmatmul.mubr.f32.gmra.mrb[0].mxu0 %v206
    %v274 = vpop.f32.mrb[0].mxu0
    %v275 = vadd.f32 %v201, %v274
    %v276 = vpop.f32.mrb[0].mxu0
    %277 = vdwg.mxu0
    %v278 = vld [vmem:[%s5] sm:$0x1]
    %v280 = vlaneseq
    %v281 = vshrl.u32 %v280, 7
    %v282 = vsub.s32 0, %v281
    %v283 = vrot.slane %v278, %v282
    %v285 = vadd.f32 %v275, %v283
    %v286 = vxor.u32 %v285, 2147483648
    %v287 = vmul.f32 %v286, 1.442695
    %v288 = vpow.pop %v287
    %v289 = vadd.f32 %v288, 1.0
    %v290 = vrcp.pop %v289
    %v291 = vmul.f32 1.0, %v290
    %v292 = vtanh.pop %v285
    %294 = vrot.lane.b32.xlu0 %v112, 32
    %v295 = vpop.permute.xlu0 %294
    %v297 = vmul.f32 %v291, %v295
    %299 = vrot.lane.b32.xlu0 %v292, 64
    %v300 = vpop.permute.xlu0 %299
    %v302 = vmul.f32 %v291, %v300
    %304 = vrot.lane.b32.xlu0 %v302, 32
    %v305 = vpop.permute.xlu0 %304
    %v307 = vadd.f32 %v297, %v305
    %v308 = vtanh.pop %v307
    %310 = vrot.lane.b32.xlu0 %v308, 64
    %v311 = vpop.permute.xlu0 %310
    %v313 = vmul.f32 %v291, %v311
    %v314 = vld [vmem:[#allocation12] sm:$0xff]
    %v315 = vld [vmem:[#allocation12 + $0x8] sm:$0xff]
    %v316 = vld [vmem:[#allocation12 + $0x10] sm:$0xff]
    %v317 = vld [vmem:[#allocation12 + $0x18] sm:$0xff]
    %v318 = vld [vmem:[%s7] sm:$0x1]
    %v320 = vlaneseq
    %v321 = vshrl.u32 %v320, 7
    %v322 = vsub.s32 0, %v321
    %v323 = vrot.slane %v318, %v322
    %326 = vrot.lane.b32.xlu0 %v313, 32
    %v327 = vpop.permute.xlu0 %326
    %v328 = vsel %vm130, %v327, 0
    %330 = vmatprep.subr.mxu0 0.0
    %331 = vmatpush1.msra.mxu0 %v314
    %332 = vmatprep.subr.mxu0 0.0
    %333 = vmatpush1.msra.mxu0 %v315
    %334 = vmatprep.subr.mxu0 0.0
    %335 = vmatpush1.msra.mxu0 %v316
    %336 = vmatprep.subr.mxu0 0.0
    %337 = vmatpush1.msra.mxu0 %v317
    %338 = vmatprep.subr.mxu0 0.0
    %339 = vmatpush1.msra.mxu0 0.0
    %340 = vmatprep.subr.mxu0 0.0
    %341 = vmatpush1.msra.mxu0 0.0
    %342 = vmatprep.subr.mxu0 0.0
    %343 = vmatpush1.msra.mxu0 0.0
    %344 = vmatprep.subr.mxu0 0.0
    %345 = vmatpush1.msra.mxu0 0.0
    %346 = vmatprep.subr.mxu0 0.0
    %347 = vmatpush1.msra.mxu0 0.0
    %348 = vmatprep.subr.mxu0 0.0
    %349 = vmatpush1.msra.mxu0 0.0
    %350 = vmatprep.subr.mxu0 0.0
    %351 = vmatpush1.msra.mxu0 0.0
    %352 = vmatprep.subr.mxu0 0.0
    %353 = vmatpush1.msra.mxu0 0.0
    %354 = vmatprep.subr.mxu0 0.0
    %355 = vmatpush1.msra.mxu0 0.0
    %356 = vmatprep.subr.mxu0 0.0
    %357 = vmatpush1.msra.mxu0 0.0
    %358 = vmatprep.subr.mxu0 0.0
    %359 = vmatpush1.msra.mxu0 0.0
    %360 = vmatprep.subr.mxu0 0.0
    %361 = vmatpush1.msra.mxu0 0.0
    %362 = vmatprep.subr.mxu0 0.0
    %363 = vmatpush1.msra.mxu0 0.0
    %364 = vmatprep.subr.mxu0 0.0
    %365 = vmatpush1.msra.mxu0 0.0
    %366 = vmatprep.subr.mxu0 0.0
    %367 = vmatpush1.msra.mxu0 0.0
    %368 = vmatprep.subr.mxu0 0.0
    %369 = vmatpush1.msra.mxu0 0.0
    %370 = vmatprep.subr.mxu0 0.0
    %371 = vmatpush1.msra.mxu0 0.0
    %372 = vmatprep.subr.mxu0 0.0
    %373 = vmatpush1.msra.mxu0 0.0
    %374 = vmatprep.subr.mxu0 0.0
    %375 = vmatpush1.msra.mxu0 0.0
    %376 = vmatprep.subr.mxu0 0.0
    %377 = vmatpush1.msra.mxu0 0.0
    %378 = vmatprep.subr.mxu0 0.0
    %379 = vmatpush1.msra.mxu0 0.0
    %380 = vmatprep.subr.mxu0 0.0
    %381 = vmatpush1.msra.mxu0 0.0
    %382 = vmatprep.subr.mxu0 0.0
    %383 = vmatpush1.msra.mxu0 0.0
    %384 = vmatprep.subr.mxu0 0.0
    %385 = vmatpush1.msra.mxu0 0.0
    %386 = vmatprep.subr.mxu0 0.0
    %387 = vmatpush1.msra.mxu0 0.0
    %388 = vmatprep.subr.mxu0 0.0
    %389 = vmatpush1.msra.mxu0 0.0
    %390 = vmatprep.subr.mxu0 0.0
    %391 = vmatpush1.msra.mxu0 0.0
    %392 = vmatprep.subr.mxu0 0.0
    %393 = vmatpush1.msra.mxu0 0.0
    %394 = vmatprep.mubr.f32.mxu0 0.0
    %395 = vmatmul.mubr.f32.gmra.mrb[0].mxu0 %v328
    %v396 = vpop.f32.mrb[0].mxu0
    %v397 = vadd.f32 %v323, %v396
    %v398 = vpop.f32.mrb[0].mxu0
    %399 = vdwg.mxu0
    %v400 = vmul.f32 %v397, 0.2
    %v401 = vtanh.pop %v400
    %v402 = vmul.f32 %v401, 2.5
    %403 = vst [vmem:[#allocation14] sm:$0xff] %v402
    %s404 = scalar_lea.vmem [#allocation3], 8
    %v405 = vld [vmem:[%s404] sm:$0xff]
    %v406 = vld [vmem:[#allocation9] sm:$0xff]
    %v407 = vld [vmem:[#allocation9 + $0x8] sm:$0xff]
    %v408 = vld [vmem:[#allocation9 + $0x10] sm:$0xff]
    %v409 = vld [vmem:[#allocation9 + $0x18] sm:$0xff]
    %v410 = vld [vmem:[#allocation9 + $0x20] sm:$0xff]
    %v411 = vld [vmem:[#allocation9 + $0x28] sm:$0xff]
    %v412 = vld [vmem:[#allocation9 + $0x30] sm:$0xff]
    %v413 = vld [vmem:[#allocation9 + $0x38] sm:$0xff]
    %v414 = vld [vmem:[#allocation9 + $0x40] sm:$0xff]
    %v415 = vld [vmem:[#allocation9 + $0x48] sm:$0xff]
    %v416 = vld [vmem:[#allocation9 + $0x50] sm:$0xff]
    %v417 = vld [vmem:[#allocation9 + $0x58] sm:$0xff]
    %v418 = vld [vmem:[#allocation11] sm:$0xff]
    %v419 = vld [vmem:[#allocation11 + $0x8] sm:$0xff]
    %v420 = vld [vmem:[#allocation11 + $0x10] sm:$0xff]
    %v421 = vld [vmem:[#allocation11 + $0x18] sm:$0xff]
    %422 = vmatprep.subr.mxu0 0.0
    %423 = vmatpush1.msra.mxu0 %v418
    %424 = vmatprep.subr.mxu0 0.0
    %425 = vmatpush1.msra.mxu0 %v419
    %426 = vmatprep.subr.mxu0 0.0
    %427 = vmatpush1.msra.mxu0 %v420
    %428 = vmatprep.subr.mxu0 0.0
    %429 = vmatpush1.msra.mxu0 %v421
    %430 = vmatprep.subr.mxu0 0.0
    %431 = vmatpush1.msra.mxu0 0.0
    %432 = vmatprep.subr.mxu0 0.0
    %433 = vmatpush1.msra.mxu0 0.0
    %434 = vmatprep.subr.mxu0 0.0
    %435 = vmatpush1.msra.mxu0 0.0
    %436 = vmatprep.subr.mxu0 0.0
    %437 = vmatpush1.msra.mxu0 0.0
    %438 = vmatprep.subr.mxu0 0.0
    %439 = vmatpush1.msra.mxu0 0.0
    %440 = vmatprep.subr.mxu0 0.0
    %441 = vmatpush1.msra.mxu0 0.0
    %442 = vmatprep.subr.mxu0 0.0
    %443 = vmatpush1.msra.mxu0 0.0
    %444 = vmatprep.subr.mxu0 0.0
    %445 = vmatpush1.msra.mxu0 0.0
    %446 = vmatprep.subr.mxu0 0.0
    %447 = vmatpush1.msra.mxu0 0.0
    %448 = vmatprep.subr.mxu0 0.0
    %449 = vmatpush1.msra.mxu0 0.0
    %450 = vmatprep.subr.mxu0 0.0
    %451 = vmatpush1.msra.mxu0 0.0
    %452 = vmatprep.subr.mxu0 0.0
    %453 = vmatpush1.msra.mxu0 0.0
    %454 = vmatprep.subr.mxu0 0.0
    %455 = vmatpush1.msra.mxu0 0.0
    %456 = vmatprep.subr.mxu0 0.0
    %457 = vmatpush1.msra.mxu0 0.0
    %458 = vmatprep.subr.mxu0 0.0
    %459 = vmatpush1.msra.mxu0 0.0
    %460 = vmatprep.subr.mxu0 0.0
    %461 = vmatpush1.msra.mxu0 0.0
    %462 = vmatprep.subr.mxu0 0.0
    %463 = vmatpush1.msra.mxu0 0.0
    %464 = vmatprep.subr.mxu0 0.0
    %465 = vmatpush1.msra.mxu0 0.0
    %466 = vmatprep.subr.mxu0 0.0
    %467 = vmatpush1.msra.mxu0 0.0
    %468 = vmatprep.subr.mxu0 0.0
    %469 = vmatpush1.msra.mxu0 0.0
    %470 = vmatprep.subr.mxu0 0.0
    %471 = vmatpush1.msra.mxu0 0.0
    %472 = vmatprep.subr.mxu0 0.0
    %473 = vmatpush1.msra.mxu0 0.0
    %474 = vmatprep.subr.mxu0 0.0
    %475 = vmatpush1.msra.mxu0 0.0
    %476 = vmatprep.subr.mxu0 0.0
    %477 = vmatpush1.msra.mxu0 0.0
    %478 = vmatprep.subr.mxu0 0.0
    %479 = vmatpush1.msra.mxu0 0.0
    %480 = vmatprep.subr.mxu0 0.0
    %481 = vmatpush1.msra.mxu0 0.0
    %482 = vmatprep.subr.mxu0 0.0
    %483 = vmatpush1.msra.mxu0 0.0
    %484 = vmatprep.subr.mxu0 0.0
    %485 = vmatpush1.msra.mxu0 0.0
    %486 = vmatprep.mubr.f32.mxu0 0.0
    %487 = vmatmul.mubr.f32.gmra.mrb[0].mxu0 %v328
    %v488 = vpop.f32.mrb[0].mxu0
    %v489 = vadd.f32 0.0, %v488
    %v490 = vpop.f32.mrb[0].mxu0
    %491 = vdwg.mxu0
    %v493 = vsel %vm204, %v405, 0
    %495 = vmatprep.subr.mxu0 0.0
    %496 = vmatpush1.msra.mxu0 %v406
    %497 = vmatprep.subr.mxu0 0.0
    %498 = vmatpush1.msra.mxu0 %v407
    %499 = vmatprep.subr.mxu0 0.0
    %500 = vmatpush1.msra.mxu0 %v408
    %501 = vmatprep.subr.mxu0 0.0
    %502 = vmatpush1.msra.mxu0 %v409
    %503 = vmatprep.subr.mxu0 0.0
    %504 = vmatpush1.msra.mxu0 %v410
    %505 = vmatprep.subr.mxu0 0.0
    %506 = vmatpush1.msra.mxu0 %v411
    %507 = vmatprep.subr.mxu0 0.0
    %508 = vmatpush1.msra.mxu0 %v412
    %509 = vmatprep.subr.mxu0 0.0
    %510 = vmatpush1.msra.mxu0 %v413
    %511 = vmatprep.subr.mxu0 0.0
    %512 = vmatpush1.msra.mxu0 %v414
    %513 = vmatprep.subr.mxu0 0.0
    %514 = vmatpush1.msra.mxu0 %v415
    %515 = vmatprep.subr.mxu0 0.0
    %516 = vmatpush1.msra.mxu0 %v416
    %517 = vmatprep.subr.mxu0 0.0
    %518 = vmatpush1.msra.mxu0 %v417
    %519 = vmatprep.subr.mxu0 0.0
    %520 = vmatpush1.msra.mxu0 0.0
    %521 = vmatprep.subr.mxu0 0.0
    %522 = vmatpush1.msra.mxu0 0.0
    %523 = vmatprep.subr.mxu0 0.0
    %524 = vmatpush1.msra.mxu0 0.0
    %525 = vmatprep.subr.mxu0 0.0
    %526 = vmatpush1.msra.mxu0 0.0
    %527 = vmatprep.subr.mxu0 0.0
    %528 = vmatpush1.msra.mxu0 0.0
    %529 = vmatprep.subr.mxu0 0.0
    %530 = vmatpush1.msra.mxu0 0.0
    %531 = vmatprep.subr.mxu0 0.0
    %532 = vmatpush1.msra.mxu0 0.0
    %533 = vmatprep.subr.mxu0 0.0
    %534 = vmatpush1.msra.mxu0 0.0
    %535 = vmatprep.subr.mxu0 0.0
    %536 = vmatpush1.msra.mxu0 0.0
    %537 = vmatprep.subr.mxu0 0.0
    %538 = vmatpush1.msra.mxu0 0.0
    %539 = vmatprep.subr.mxu0 0.0
    %540 = vmatpush1.msra.mxu0 0.0
    %541 = vmatprep.subr.mxu0 0.0
    %542 = vmatpush1.msra.mxu0 0.0
    %543 = vmatprep.subr.mxu0 0.0
    %544 = vmatpush1.msra.mxu0 0.0
    %545 = vmatprep.subr.mxu0 0.0
    %546 = vmatpush1.msra.mxu0 0.0
    %547 = vmatprep.subr.mxu0 0.0
    %548 = vmatpush1.msra.mxu0 0.0
    %549 = vmatprep.subr.mxu0 0.0
    %550 = vmatpush1.msra.mxu0 0.0
    %551 = vmatprep.subr.mxu0 0.0
    %552 = vmatpush1.msra.mxu0 0.0
    %553 = vmatprep.subr.mxu0 0.0
    %554 = vmatpush1.msra.mxu0 0.0
    %555 = vmatprep.subr.mxu0 0.0
    %556 = vmatpush1.msra.mxu0 0.0
    %557 = vmatprep.subr.mxu0 0.0
    %558 = vmatpush1.msra.mxu0 0.0
    %559 = vmatprep.mubr.f32.mxu0 0.0
    %560 = vmatmul.mubr.f32.gmra.mrb[0].mxu0 %v493
    %v561 = vpop.f32.mrb[0].mxu0
    %v562 = vadd.f32 %v489, %v561
    %v563 = vpop.f32.mrb[0].mxu0
    %564 = vdwg.mxu0
    %v565 = vld [vmem:[%s5] sm:$0x1]
    %v567 = vlaneseq
    %v568 = vshrl.u32 %v567, 7
    %v569 = vsub.s32 0, %v568
    %v570 = vrot.slane %v565, %v569
    %v572 = vadd.f32 %v562, %v570
    %v573 = vxor.u32 %v572, 2147483648
    %v574 = vmul.f32 %v573, 1.442695
    %v575 = vpow.pop %v574
    %v576 = vadd.f32 %v575, 1.0
    %v577 = vrcp.pop %v576
    %v578 = vmul.f32 1.0, %v577
    %v579 = vtanh.pop %v572
    %v580 = vmul.f32 %v578, %v307
    %582 = vrot.lane.b32.xlu0 %v579, 64
    %v583 = vpop.permute.xlu0 %582
    %v585 = vmul.f32 %v578, %v583
    %587 = vrot.lane.b32.xlu0 %v585, 32
    %v588 = vpop.permute.xlu0 %587
    %v590 = vadd.f32 %v580, %v588
    %v591 = vtanh.pop %v590
    %593 = vrot.lane.b32.xlu0 %v591, 64
    %v594 = vpop.permute.xlu0 %593
    %v596 = vmul.f32 %v578, %v594
    %v597 = vld [vmem:[#allocation12] sm:$0xff]
    %v598 = vld [vmem:[#allocation12 + $0x8] sm:$0xff]
    %v599 = vld [vmem:[#allocation12 + $0x10] sm:$0xff]
    %v600 = vld [vmem:[#allocation12 + $0x18] sm:$0xff]
    %v601 = vld [vmem:[%s7] sm:$0x1]
    %v603 = vlaneseq
    %v604 = vshrl.u32 %v603, 7
    %v605 = vsub.s32 0, %v604
    %v606 = vrot.slane %v601, %v605
    %609 = vrot.lane.b32.xlu0 %v596, 32
    %v610 = vpop.permute.xlu0 %609
    %v611 = vsel %vm130, %v610, 0
    %613 = vmatprep.subr.mxu0 0.0
    %614 = vmatpush1.msra.mxu0 %v597
    %615 = vmatprep.subr.mxu0 0.0
    %616 = vmatpush1.msra.mxu0 %v598
    %617 = vmatprep.subr.mxu0 0.0
    %618 = vmatpush1.msra.mxu0 %v599
    %619 = vmatprep.subr.mxu0 0.0
    %620 = vmatpush1.msra.mxu0 %v600
    %621 = vmatprep.subr.mxu0 0.0
    %622 = vmatpush1.msra.mxu0 0.0
    %623 = vmatprep.subr.mxu0 0.0
    %624 = vmatpush1.msra.mxu0 0.0
    %625 = vmatprep.subr.mxu0 0.0
    %626 = vmatpush1.msra.mxu0 0.0
    %627 = vmatprep.subr.mxu0 0.0
    %628 = vmatpush1.msra.mxu0 0.0
    %629 = vmatprep.subr.mxu0 0.0
    %630 = vmatpush1.msra.mxu0 0.0
    %631 = vmatprep.subr.mxu0 0.0
    %632 = vmatpush1.msra.mxu0 0.0
    %633 = vmatprep.subr.mxu0 0.0
    %634 = vmatpush1.msra.mxu0 0.0
    %635 = vmatprep.subr.mxu0 0.0
    %636 = vmatpush1.msra.mxu0 0.0
    %637 = vmatprep.subr.mxu0 0.0
    %638 = vmatpush1.msra.mxu0 0.0
    %639 = vmatprep.subr.mxu0 0.0
    %640 = vmatpush1.msra.mxu0 0.0
    %641 = vmatprep.subr.mxu0 0.0
    %642 = vmatpush1.msra.mxu0 0.0
    %643 = vmatprep.subr.mxu0 0.0
    %644 = vmatpush1.msra.mxu0 0.0
    %645 = vmatprep.subr.mxu0 0.0
    %646 = vmatpush1.msra.mxu0 0.0
    %647 = vmatprep.subr.mxu0 0.0
    %648 = vmatpush1.msra.mxu0 0.0
    %649 = vmatprep.subr.mxu0 0.0
    %650 = vmatpush1.msra.mxu0 0.0
    %651 = vmatprep.subr.mxu0 0.0
    %652 = vmatpush1.msra.mxu0 0.0
    %653 = vmatprep.subr.mxu0 0.0
    %654 = vmatpush1.msra.mxu0 0.0
    %655 = vmatprep.subr.mxu0 0.0
    %656 = vmatpush1.msra.mxu0 0.0
    %657 = vmatprep.subr.mxu0 0.0
    %658 = vmatpush1.msra.mxu0 0.0
    %659 = vmatprep.subr.mxu0 0.0
    %660 = vmatpush1.msra.mxu0 0.0
    %661 = vmatprep.subr.mxu0 0.0
    %662 = vmatpush1.msra.mxu0 0.0
    %663 = vmatprep.subr.mxu0 0.0
    %664 = vmatpush1.msra.mxu0 0.0
    %665 = vmatprep.subr.mxu0 0.0
    %666 = vmatpush1.msra.mxu0 0.0
    %667 = vmatprep.subr.mxu0 0.0
    %668 = vmatpush1.msra.mxu0 0.0
    %669 = vmatprep.subr.mxu0 0.0
    %670 = vmatpush1.msra.mxu0 0.0
    %671 = vmatprep.subr.mxu0 0.0
    %672 = vmatpush1.msra.mxu0 0.0
    %673 = vmatprep.subr.mxu0 0.0
    %674 = vmatpush1.msra.mxu0 0.0
    %675 = vmatprep.subr.mxu0 0.0
    %676 = vmatpush1.msra.mxu0 0.0
    %677 = vmatprep.mubr.f32.mxu0 0.0
    %678 = vmatmul.mubr.f32.gmra.mrb[0].mxu0 %v611
    %v679 = vpop.f32.mrb[0].mxu0
    %v680 = vadd.f32 %v606, %v679
    %v681 = vpop.f32.mrb[0].mxu0
    %682 = vdwg.mxu0
    %v683 = vmul.f32 %v680, 0.2
    %v684 = vtanh.pop %v683
    %v685 = vmul.f32 %v684, 2.5
    %s686 = scalar_lea.vmem [#allocation14], 8
    %687 = vst [vmem:[%s686] sm:$0xff] %v685
    %s688 = scalar_lea.vmem [#allocation3], 16
    %v689 = vld [vmem:[%s688] sm:$0xff]
    %v690 = vld [vmem:[#allocation9] sm:$0xff]
    %v691 = vld [vmem:[#allocation9 + $0x8] sm:$0xff]
    %v692 = vld [vmem:[#allocation9 + $0x10] sm:$0xff]
    %v693 = vld [vmem:[#allocation9 + $0x18] sm:$0xff]
    %v694 = vld [vmem:[#allocation9 + $0x20] sm:$0xff]
    %v695 = vld [vmem:[#allocation9 + $0x28] sm:$0xff]
    %v696 = vld [vmem:[#allocation9 + $0x30] sm:$0xff]
    %v697 = vld [vmem:[#allocation9 + $0x38] sm:$0xff]
    %v698 = vld [vmem:[#allocation9 + $0x40] sm:$0xff]
    %v699 = vld [vmem:[#allocation9 + $0x48] sm:$0xff]
    %v700 = vld [vmem:[#allocation9 + $0x50] sm:$0xff]
    %v701 = vld [vmem:[#allocation9 + $0x58] sm:$0xff]
    %v702 = vld [vmem:[#allocation11] sm:$0xff]
    %v703 = vld [vmem:[#allocation11 + $0x8] sm:$0xff]
    %v704 = vld [vmem:[#allocation11 + $0x10] sm:$0xff]
    %v705 = vld [vmem:[#allocation11 + $0x18] sm:$0xff]
    %706 = vmatprep.subr.mxu0 0.0
    %707 = vmatpush1.msra.mxu0 %v702
    %708 = vmatprep.subr.mxu0 0.0
    %709 = vmatpush1.msra.mxu0 %v703
    %710 = vmatprep.subr.mxu0 0.0
    %711 = vmatpush1.msra.mxu0 %v704
    %712 = vmatprep.subr.mxu0 0.0
    %713 = vmatpush1.msra.mxu0 %v705
    %714 = vmatprep.subr.mxu0 0.0
    %715 = vmatpush1.msra.mxu0 0.0
    %716 = vmatprep.subr.mxu0 0.0
    %717 = vmatpush1.msra.mxu0 0.0
    %718 = vmatprep.subr.mxu0 0.0
    %719 = vmatpush1.msra.mxu0 0.0
    %720 = vmatprep.subr.mxu0 0.0
    %721 = vmatpush1.msra.mxu0 0.0
    %722 = vmatprep.subr.mxu0 0.0
    %723 = vmatpush1.msra.mxu0 0.0
    %724 = vmatprep.subr.mxu0 0.0
    %725 = vmatpush1.msra.mxu0 0.0
    %726 = vmatprep.subr.mxu0 0.0
    %727 = vmatpush1.msra.mxu0 0.0
    %728 = vmatprep.subr.mxu0 0.0
    %729 = vmatpush1.msra.mxu0 0.0
    %730 = vmatprep.subr.mxu0 0.0
    %731 = vmatpush1.msra.mxu0 0.0
    %732 = vmatprep.subr.mxu0 0.0
    %733 = vmatpush1.msra.mxu0 0.0
    %734 = vmatprep.subr.mxu0 0.0
    %735 = vmatpush1.msra.mxu0 0.0
    %736 = vmatprep.subr.mxu0 0.0
    %737 = vmatpush1.msra.mxu0 0.0
    %738 = vmatprep.subr.mxu0 0.0
    %739 = vmatpush1.msra.mxu0 0.0
    %740 = vmatprep.subr.mxu0 0.0
    %741 = vmatpush1.msra.mxu0 0.0
    %742 = vmatprep.subr.mxu0 0.0
    %743 = vmatpush1.msra.mxu0 0.0
    %744 = vmatprep.subr.mxu0 0.0
    %745 = vmatpush1.msra.mxu0 0.0
    %746 = vmatprep.subr.mxu0 0.0
    %747 = vmatpush1.msra.mxu0 0.0
    %748 = vmatprep.subr.mxu0 0.0
    %749 = vmatpush1.msra.mxu0 0.0
    %750 = vmatprep.subr.mxu0 0.0
    %751 = vmatpush1.msra.mxu0 0.0
    %752 = vmatprep.subr.mxu0 0.0
    %753 = vmatpush1.msra.mxu0 0.0
    %754 = vmatprep.subr.mxu0 0.0
    %755 = vmatpush1.msra.mxu0 0.0
    %756 = vmatprep.subr.mxu0 0.0
    %757 = vmatpush1.msra.mxu0 0.0
    %758 = vmatprep.subr.mxu0 0.0
    %759 = vmatpush1.msra.mxu0 0.0
    %760 = vmatprep.subr.mxu0 0.0
    %761 = vmatpush1.msra.mxu0 0.0
    %762 = vmatprep.subr.mxu0 0.0
    %763 = vmatpush1.msra.mxu0 0.0
    %764 = vmatprep.subr.mxu0 0.0
    %765 = vmatpush1.msra.mxu0 0.0
    %766 = vmatprep.subr.mxu0 0.0
    %767 = vmatpush1.msra.mxu0 0.0
    %768 = vmatprep.subr.mxu0 0.0
    %769 = vmatpush1.msra.mxu0 0.0
    %770 = vmatprep.mubr.f32.mxu0 0.0
    %771 = vmatmul.mubr.f32.gmra.mrb[0].mxu0 %v611
    %v772 = vpop.f32.mrb[0].mxu0
    %v773 = vadd.f32 0.0, %v772
    %v774 = vpop.f32.mrb[0].mxu0
    %775 = vdwg.mxu0
    %v777 = vsel %vm204, %v689, 0
    %779 = vmatprep.subr.mxu0 0.0
    %780 = vmatpush1.msra.mxu0 %v690
    %781 = vmatprep.subr.mxu0 0.0
    %782 = vmatpush1.msra.mxu0 %v691
    %783 = vmatprep.subr.mxu0 0.0
    %784 = vmatpush1.msra.mxu0 %v692
    %785 = vmatprep.subr.mxu0 0.0
    %786 = vmatpush1.msra.mxu0 %v693
    %787 = vmatprep.subr.mxu0 0.0
    %788 = vmatpush1.msra.mxu0 %v694
    %789 = vmatprep.subr.mxu0 0.0
    %790 = vmatpush1.msra.mxu0 %v695
    %791 = vmatprep.subr.mxu0 0.0
    %792 = vmatpush1.msra.mxu0 %v696
    %793 = vmatprep.subr.mxu0 0.0
    %794 = vmatpush1.msra.mxu0 %v697
    %795 = vmatprep.subr.mxu0 0.0
    %796 = vmatpush1.msra.mxu0 %v698
    %797 = vmatprep.subr.mxu0 0.0
    %798 = vmatpush1.msra.mxu0 %v699
    %799 = vmatprep.subr.mxu0 0.0
    %800 = vmatpush1.msra.mxu0 %v700
    %801 = vmatprep.subr.mxu0 0.0
    %802 = vmatpush1.msra.mxu0 %v701
    %803 = vmatprep.subr.mxu0 0.0
    %804 = vmatpush1.msra.mxu0 0.0
    %805 = vmatprep.subr.mxu0 0.0
    %806 = vmatpush1.msra.mxu0 0.0
    %807 = vmatprep.subr.mxu0 0.0
    %808 = vmatpush1.msra.mxu0 0.0
    %809 = vmatprep.subr.mxu0 0.0
    %810 = vmatpush1.msra.mxu0 0.0
    %811 = vmatprep.subr.mxu0 0.0
    %812 = vmatpush1.msra.mxu0 0.0
    %813 = vmatprep.subr.mxu0 0.0
    %814 = vmatpush1.msra.mxu0 0.0
    %815 = vmatprep.subr.mxu0 0.0
    %816 = vmatpush1.msra.mxu0 0.0
    %817 = vmatprep.subr.mxu0 0.0
    %818 = vmatpush1.msra.mxu0 0.0
    %819 = vmatprep.subr.mxu0 0.0
    %820 = vmatpush1.msra.mxu0 0.0
    %821 = vmatprep.subr.mxu0 0.0
    %822 = vmatpush1.msra.mxu0 0.0
    %823 = vmatprep.subr.mxu0 0.0
    %824 = vmatpush1.msra.mxu0 0.0
    %825 = vmatprep.subr.mxu0 0.0
    %826 = vmatpush1.msra.mxu0 0.0
    %827 = vmatprep.subr.mxu0 0.0
    %828 = vmatpush1.msra.mxu0 0.0
    %829 = vmatprep.subr.mxu0 0.0
    %830 = vmatpush1.msra.mxu0 0.0
    %831 = vmatprep.subr.mxu0 0.0
    %832 = vmatpush1.msra.mxu0 0.0
    %833 = vmatprep.subr.mxu0 0.0
    %834 = vmatpush1.msra.mxu0 0.0
    %835 = vmatprep.subr.mxu0 0.0
    %836 = vmatpush1.msra.mxu0 0.0
    %837 = vmatprep.subr.mxu0 0.0
    %838 = vmatpush1.msra.mxu0 0.0
    %839 = vmatprep.subr.mxu0 0.0
    %840 = vmatpush1.msra.mxu0 0.0
    %841 = vmatprep.subr.mxu0 0.0
    %842 = vmatpush1.msra.mxu0 0.0
    %843 = vmatprep.mubr.f32.mxu0 0.0
    %844 = vmatmul.mubr.f32.gmra.mrb[0].mxu0 %v777
    %v845 = vpop.f32.mrb[0].mxu0
    %v846 = vadd.f32 %v773, %v845
    %v847 = vpop.f32.mrb[0].mxu0
    %848 = vdwg.mxu0
    %v849 = vld [vmem:[%s5] sm:$0x1]
    %v851 = vlaneseq
    %v852 = vshrl.u32 %v851, 7
    %v853 = vsub.s32 0, %v852
    %v854 = vrot.slane %v849, %v853
    %v856 = vadd.f32 %v846, %v854
    %v857 = vxor.u32 %v856, 2147483648
    %v858 = vmul.f32 %v857, 1.442695
    %v859 = vpow.pop %v858
    %v860 = vadd.f32 %v859, 1.0
    %v861 = vrcp.pop %v860
    %v862 = vmul.f32 1.0, %v861
    %v863 = vtanh.pop %v856
    %v864 = vmul.f32 %v862, %v590
    %866 = vrot.lane.b32.xlu0 %v863, 64
    %v867 = vpop.permute.xlu0 %866
    %v869 = vmul.f32 %v862, %v867
    %871 = vrot.lane.b32.xlu0 %v869, 32
    %v872 = vpop.permute.xlu0 %871
    %v874 = vadd.f32 %v864, %v872
    %v875 = vtanh.pop %v874
    %877 = vrot.lane.b32.xlu0 %v875, 64
    %v878 = vpop.permute.xlu0 %877
    %v880 = vmul.f32 %v862, %v878
    %v881 = vld [vmem:[#allocation12] sm:$0xff]
    %v882 = vld [vmem:[#allocation12 + $0x8] sm:$0xff]
    %v883 = vld [vmem:[#allocation12 + $0x10] sm:$0xff]
    %v884 = vld [vmem:[#allocation12 + $0x18] sm:$0xff]
    %v885 = vld [vmem:[%s7] sm:$0x1]
    %v887 = vlaneseq
    %v888 = vshrl.u32 %v887, 7
    %v889 = vsub.s32 0, %v888
    %v890 = vrot.slane %v885, %v889
    %893 = vrot.lane.b32.xlu0 %v880, 32
    %v894 = vpop.permute.xlu0 %893
    %v895 = vsel %vm130, %v894, 0
    %897 = vmatprep.subr.mxu0 0.0
    %898 = vmatpush1.msra.mxu0 %v881
    %899 = vmatprep.subr.mxu0 0.0
    %900 = vmatpush1.msra.mxu0 %v882
    %901 = vmatprep.subr.mxu0 0.0
    %902 = vmatpush1.msra.mxu0 %v883
    %903 = vmatprep.subr.mxu0 0.0
    %904 = vmatpush1.msra.mxu0 %v884
    %905 = vmatprep.subr.mxu0 0.0
    %906 = vmatpush1.msra.mxu0 0.0
    %907 = vmatprep.subr.mxu0 0.0
    %908 = vmatpush1.msra.mxu0 0.0
    %909 = vmatprep.subr.mxu0 0.0
    %910 = vmatpush1.msra.mxu0 0.0
    %911 = vmatprep.subr.mxu0 0.0
    %912 = vmatpush1.msra.mxu0 0.0
    %913 = vmatprep.subr.mxu0 0.0
    %914 = vmatpush1.msra.mxu0 0.0
    %915 = vmatprep.subr.mxu0 0.0
    %916 = vmatpush1.msra.mxu0 0.0
    %917 = vmatprep.subr.mxu0 0.0
    %918 = vmatpush1.msra.mxu0 0.0
    %919 = vmatprep.subr.mxu0 0.0
    %920 = vmatpush1.msra.mxu0 0.0
    %921 = vmatprep.subr.mxu0 0.0
    %922 = vmatpush1.msra.mxu0 0.0
    %923 = vmatprep.subr.mxu0 0.0
    %924 = vmatpush1.msra.mxu0 0.0
    %925 = vmatprep.subr.mxu0 0.0
    %926 = vmatpush1.msra.mxu0 0.0
    %927 = vmatprep.subr.mxu0 0.0
    %928 = vmatpush1.msra.mxu0 0.0
    %929 = vmatprep.subr.mxu0 0.0
    %930 = vmatpush1.msra.mxu0 0.0
    %931 = vmatprep.subr.mxu0 0.0
    %932 = vmatpush1.msra.mxu0 0.0
    %933 = vmatprep.subr.mxu0 0.0
    %934 = vmatpush1.msra.mxu0 0.0
    %935 = vmatprep.subr.mxu0 0.0
    %936 = vmatpush1.msra.mxu0 0.0
    %937 = vmatprep.subr.mxu0 0.0
    %938 = vmatpush1.msra.mxu0 0.0
    %939 = vmatprep.subr.mxu0 0.0
    %940 = vmatpush1.msra.mxu0 0.0
    %941 = vmatprep.subr.mxu0 0.0
    %942 = vmatpush1.msra.mxu0 0.0
    %943 = vmatprep.subr.mxu0 0.0
    %944 = vmatpush1.msra.mxu0 0.0
    %945 = vmatprep.subr.mxu0 0.0
    %946 = vmatpush1.msra.mxu0 0.0
    %947 = vmatprep.subr.mxu0 0.0
    %948 = vmatpush1.msra.mxu0 0.0
    %949 = vmatprep.subr.mxu0 0.0
    %950 = vmatpush1.msra.mxu0 0.0
    %951 = vmatprep.subr.mxu0 0.0
    %952 = vmatpush1.msra.mxu0 0.0
    %953 = vmatprep.subr.mxu0 0.0
    %954 = vmatpush1.msra.mxu0 0.0
    %955 = vmatprep.subr.mxu0 0.0
    %956 = vmatpush1.msra.mxu0 0.0
    %957 = vmatprep.subr.mxu0 0.0
    %958 = vmatpush1.msra.mxu0 0.0
    %959 = vmatprep.subr.mxu0 0.0
    %960 = vmatpush1.msra.mxu0 0.0
    %961 = vmatprep.mubr.f32.mxu0 0.0
    %962 = vmatmul.mubr.f32.gmra.mrb[0].mxu0 %v895
    %v963 = vpop.f32.mrb[0].mxu0
    %v964 = vadd.f32 %v890, %v963
    %v965 = vpop.f32.mrb[0].mxu0
    %966 = vdwg.mxu0
    %v967 = vmul.f32 %v964, 0.2
    %v968 = vtanh.pop %v967
    %v969 = vmul.f32 %v968, 2.5
    %s970 = scalar_lea.vmem [#allocation14], 16
    %971 = vst [vmem:[%s970] sm:$0xff] %v969
    %s972 = scalar_lea.vmem [#allocation3], 24
    %v973 = vld [vmem:[%s972] sm:$0xff]
    %v974 = vld [vmem:[#allocation9] sm:$0xff]
    %v975 = vld [vmem:[#allocation9 + $0x8] sm:$0xff]
    %v976 = vld [vmem:[#allocation9 + $0x10] sm:$0xff]
    %v977 = vld [vmem:[#allocation9 + $0x18] sm:$0xff]
    %v978 = vld [vmem:[#allocation9 + $0x20] sm:$0xff]
    %v979 = vld [vmem:[#allocation9 + $0x28] sm:$0xff]
    %v980 = vld [vmem:[#allocation9 + $0x30] sm:$0xff]
    %v981 = vld [vmem:[#allocation9 + $0x38] sm:$0xff]
    %v982 = vld [vmem:[#allocation9 + $0x40] sm:$0xff]
    %v983 = vld [vmem:[#allocation9 + $0x48] sm:$0xff]
    %v984 = vld [vmem:[#allocation9 + $0x50] sm:$0xff]
    %v985 = vld [vmem:[#allocation9 + $0x58] sm:$0xff]
    %v986 = vld [vmem:[#allocation11] sm:$0xff]
    %v987 = vld [vmem:[#allocation11 + $0x8] sm:$0xff]
    %v988 = vld [vmem:[#allocation11 + $0x10] sm:$0xff]
    %v989 = vld [vmem:[#allocation11 + $0x18] sm:$0xff]
    %990 = vmatprep.subr.mxu0 0.0
    %991 = vmatpush1.msra.mxu0 %v986
    %992 = vmatprep.subr.mxu0 0.0
    %993 = vmatpush1.msra.mxu0 %v987
    %994 = vmatprep.subr.mxu0 0.0
    %995 = vmatpush1.msra.mxu0 %v988
    %996 = vmatprep.subr.mxu0 0.0
    %997 = vmatpush1.msra.mxu0 %v989
    %998 = vmatprep.subr.mxu0 0.0
    %999 = vmatpush1.msra.mxu0 0.0
    %1000 = vmatprep.subr.mxu0 0.0
    %1001 = vmatpush1.msra.mxu0 0.0
    %1002 = vmatprep.subr.mxu0 0.0
    %1003 = vmatpush1.msra.mxu0 0.0
    %1004 = vmatprep.subr.mxu0 0.0
    %1005 = vmatpush1.msra.mxu0 0.0
    %1006 = vmatprep.subr.mxu0 0.0
    %1007 = vmatpush1.msra.mxu0 0.0
    %1008 = vmatprep.subr.mxu0 0.0
    %1009 = vmatpush1.msra.mxu0 0.0
    %1010 = vmatprep.subr.mxu0 0.0
    %1011 = vmatpush1.msra.mxu0 0.0
    %1012 = vmatprep.subr.mxu0 0.0
    %1013 = vmatpush1.msra.mxu0 0.0
    %1014 = vmatprep.subr.mxu0 0.0
    %1015 = vmatpush1.msra.mxu0 0.0
    %1016 = vmatprep.subr.mxu0 0.0
    %1017 = vmatpush1.msra.mxu0 0.0
    %1018 = vmatprep.subr.mxu0 0.0
    %1019 = vmatpush1.msra.mxu0 0.0
    %1020 = vmatprep.subr.mxu0 0.0
    %1021 = vmatpush1.msra.mxu0 0.0
    %1022 = vmatprep.subr.mxu0 0.0
    %1023 = vmatpush1.msra.mxu0 0.0
    %1024 = vmatprep.subr.mxu0 0.0
    %1025 = vmatpush1.msra.mxu0 0.0
    %1026 = vmatprep.subr.mxu0 0.0
    %1027 = vmatpush1.msra.mxu0 0.0
    %1028 = vmatprep.subr.mxu0 0.0
    %1029 = vmatpush1.msra.mxu0 0.0
    %1030 = vmatprep.subr.mxu0 0.0
    %1031 = vmatpush1.msra.mxu0 0.0
    %1032 = vmatprep.subr.mxu0 0.0
    %1033 = vmatpush1.msra.mxu0 0.0
    %1034 = vmatprep.subr.mxu0 0.0
    %1035 = vmatpush1.msra.mxu0 0.0
    %1036 = vmatprep.subr.mxu0 0.0
    %1037 = vmatpush1.msra.mxu0 0.0
    %1038 = vmatprep.subr.mxu0 0.0
    %1039 = vmatpush1.msra.mxu0 0.0
    %1040 = vmatprep.subr.mxu0 0.0
    %1041 = vmatpush1.msra.mxu0 0.0
    %1042 = vmatprep.subr.mxu0 0.0
    %1043 = vmatpush1.msra.mxu0 0.0
    %1044 = vmatprep.subr.mxu0 0.0
    %1045 = vmatpush1.msra.mxu0 0.0
    %1046 = vmatprep.subr.mxu0 0.0
    %1047 = vmatpush1.msra.mxu0 0.0
    %1048 = vmatprep.subr.mxu0 0.0
    %1049 = vmatpush1.msra.mxu0 0.0
    %1050 = vmatprep.subr.mxu0 0.0
    %1051 = vmatpush1.msra.mxu0 0.0
    %1052 = vmatprep.subr.mxu0 0.0
    %1053 = vmatpush1.msra.mxu0 0.0
    %1054 = vmatprep.mubr.f32.mxu0 0.0
    %1055 = vmatmul.mubr.f32.gmra.mrb[0].mxu0 %v895
    %v1056 = vpop.f32.mrb[0].mxu0
    %v1057 = vadd.f32 0.0, %v1056
    %v1058 = vpop.f32.mrb[0].mxu0
    %1059 = vdwg.mxu0
    %v1061 = vsel %vm204, %v973, 0
    %1063 = vmatprep.subr.mxu0 0.0
    %1064 = vmatpush1.msra.mxu0 %v974
    %1065 = vmatprep.subr.mxu0 0.0
    %1066 = vmatpush1.msra.mxu0 %v975
    %1067 = vmatprep.subr.mxu0 0.0
    %1068 = vmatpush1.msra.mxu0 %v976
    %1069 = vmatprep.subr.mxu0 0.0
    %1070 = vmatpush1.msra.mxu0 %v977
    %1071 = vmatprep.subr.mxu0 0.0
    %1072 = vmatpush1.msra.mxu0 %v978
    %1073 = vmatprep.subr.mxu0 0.0
    %1074 = vmatpush1.msra.mxu0 %v979
    %1075 = vmatprep.subr.mxu0 0.0
    %1076 = vmatpush1.msra.mxu0 %v980
    %1077 = vmatprep.subr.mxu0 0.0
    %1078 = vmatpush1.msra.mxu0 %v981
    %1079 = vmatprep.subr.mxu0 0.0
    %1080 = vmatpush1.msra.mxu0 %v982
    %1081 = vmatprep.subr.mxu0 0.0
    %1082 = vmatpush1.msra.mxu0 %v983
    %1083 = vmatprep.subr.mxu0 0.0
    %1084 = vmatpush1.msra.mxu0 %v984
    %1085 = vmatprep.subr.mxu0 0.0
    %1086 = vmatpush1.msra.mxu0 %v985
    %1087 = vmatprep.subr.mxu0 0.0
    %1088 = vmatpush1.msra.mxu0 0.0
    %1089 = vmatprep.subr.mxu0 0.0
    %1090 = vmatpush1.msra.mxu0 0.0
    %1091 = vmatprep.subr.mxu0 0.0
    %1092 = vmatpush1.msra.mxu0 0.0
    %1093 = vmatprep.subr.mxu0 0.0
    %1094 = vmatpush1.msra.mxu0 0.0
    %1095 = vmatprep.subr.mxu0 0.0
    %1096 = vmatpush1.msra.mxu0 0.0
    %1097 = vmatprep.subr.mxu0 0.0
    %1098 = vmatpush1.msra.mxu0 0.0
    %1099 = vmatprep.subr.mxu0 0.0
    %1100 = vmatpush1.msra.mxu0 0.0
    %1101 = vmatprep.subr.mxu0 0.0
    %1102 = vmatpush1.msra.mxu0 0.0
    %1103 = vmatprep.subr.mxu0 0.0
    %1104 = vmatpush1.msra.mxu0 0.0
    %1105 = vmatprep.subr.mxu0 0.0
    %1106 = vmatpush1.msra.mxu0 0.0
    %1107 = vmatprep.subr.mxu0 0.0
    %1108 = vmatpush1.msra.mxu0 0.0
    %1109 = vmatprep.subr.mxu0 0.0
    %1110 = vmatpush1.msra.mxu0 0.0
    %1111 = vmatprep.subr.mxu0 0.0
    %1112 = vmatpush1.msra.mxu0 0.0
    %1113 = vmatprep.subr.mxu0 0.0
    %1114 = vmatpush1.msra.mxu0 0.0
    %1115 = vmatprep.subr.mxu0 0.0
    %1116 = vmatpush1.msra.mxu0 0.0
    %1117 = vmatprep.subr.mxu0 0.0
    %1118 = vmatpush1.msra.mxu0 0.0
    %1119 = vmatprep.subr.mxu0 0.0
    %1120 = vmatpush1.msra.mxu0 0.0
    %1121 = vmatprep.subr.mxu0 0.0
    %1122 = vmatpush1.msra.mxu0 0.0
    %1123 = vmatprep.subr.mxu0 0.0
    %1124 = vmatpush1.msra.mxu0 0.0
    %1125 = vmatprep.subr.mxu0 0.0
    %1126 = vmatpush1.msra.mxu0 0.0
    %1127 = vmatprep.mubr.f32.mxu0 0.0
    %1128 = vmatmul.mubr.f32.gmra.mrb[0].mxu0 %v1061
    %v1129 = vpop.f32.mrb[0].mxu0
    %v1130 = vadd.f32 %v1057, %v1129
    %v1131 = vpop.f32.mrb[0].mxu0
    %1132 = vdwg.mxu0
    %v1133 = vld [vmem:[%s5] sm:$0x1]
    %v1135 = vlaneseq
    %v1136 = vshrl.u32 %v1135, 7
    %v1137 = vsub.s32 0, %v1136
    %v1138 = vrot.slane %v1133, %v1137
    %v1140 = vadd.f32 %v1130, %v1138
    %v1141 = vxor.u32 %v1140, 2147483648
    %v1142 = vmul.f32 %v1141, 1.442695
    %v1143 = vpow.pop %v1142
    %v1144 = vadd.f32 %v1143, 1.0
    %v1145 = vrcp.pop %v1144
    %v1146 = vmul.f32 1.0, %v1145
    %v1147 = vtanh.pop %v1140
    %v1148 = vmul.f32 %v1146, %v874
    %1150 = vrot.lane.b32.xlu0 %v1147, 64
    %v1151 = vpop.permute.xlu0 %1150
    %v1153 = vmul.f32 %v1146, %v1151
    %1155 = vrot.lane.b32.xlu0 %v1153, 32
    %v1156 = vpop.permute.xlu0 %1155
    %v1158 = vadd.f32 %v1148, %v1156
    %v1159 = vtanh.pop %v1158
    %1161 = vrot.lane.b32.xlu0 %v1159, 64
    %v1162 = vpop.permute.xlu0 %1161
    %v1164 = vmul.f32 %v1146, %v1162
    %v1165 = vld [vmem:[#allocation12] sm:$0xff]
    %v1166 = vld [vmem:[#allocation12 + $0x8] sm:$0xff]
    %v1167 = vld [vmem:[#allocation12 + $0x10] sm:$0xff]
    %v1168 = vld [vmem:[#allocation12 + $0x18] sm:$0xff]
    %v1169 = vld [vmem:[%s7] sm:$0x1]
    %v1171 = vlaneseq
    %v1172 = vshrl.u32 %v1171, 7
    %v1173 = vsub.s32 0, %v1172
    %v1174 = vrot.slane %v1169, %v1173
    %1177 = vrot.lane.b32.xlu0 %v1164, 32
    %v1178 = vpop.permute.xlu0 %1177
    %v1179 = vsel %vm130, %v1178, 0
    %1181 = vmatprep.subr.mxu0 0.0
    %1182 = vmatpush1.msra.mxu0 %v1165
    %1183 = vmatprep.subr.mxu0 0.0
    %1184 = vmatpush1.msra.mxu0 %v1166
    %1185 = vmatprep.subr.mxu0 0.0
    %1186 = vmatpush1.msra.mxu0 %v1167
    %1187 = vmatprep.subr.mxu0 0.0
    %1188 = vmatpush1.msra.mxu0 %v1168
    %1189 = vmatprep.subr.mxu0 0.0
    %1190 = vmatpush1.msra.mxu0 0.0
    %1191 = vmatprep.subr.mxu0 0.0
    %1192 = vmatpush1.msra.mxu0 0.0
    %1193 = vmatprep.subr.mxu0 0.0
    %1194 = vmatpush1.msra.mxu0 0.0
    %1195 = vmatprep.subr.mxu0 0.0
    %1196 = vmatpush1.msra.mxu0 0.0
    %1197 = vmatprep.subr.mxu0 0.0
    %1198 = vmatpush1.msra.mxu0 0.0
    %1199 = vmatprep.subr.mxu0 0.0
    %1200 = vmatpush1.msra.mxu0 0.0
    %1201 = vmatprep.subr.mxu0 0.0
    %1202 = vmatpush1.msra.mxu0 0.0
    %1203 = vmatprep.subr.mxu0 0.0
    %1204 = vmatpush1.msra.mxu0 0.0
    %1205 = vmatprep.subr.mxu0 0.0
    %1206 = vmatpush1.msra.mxu0 0.0
    %1207 = vmatprep.subr.mxu0 0.0
    %1208 = vmatpush1.msra.mxu0 0.0
    %1209 = vmatprep.subr.mxu0 0.0
    %1210 = vmatpush1.msra.mxu0 0.0
    %1211 = vmatprep.subr.mxu0 0.0
    %1212 = vmatpush1.msra.mxu0 0.0
    %1213 = vmatprep.subr.mxu0 0.0
    %1214 = vmatpush1.msra.mxu0 0.0
    %1215 = vmatprep.subr.mxu0 0.0
    %1216 = vmatpush1.msra.mxu0 0.0
    %1217 = vmatprep.subr.mxu0 0.0
    %1218 = vmatpush1.msra.mxu0 0.0
    %1219 = vmatprep.subr.mxu0 0.0
    %1220 = vmatpush1.msra.mxu0 0.0
    %1221 = vmatprep.subr.mxu0 0.0
    %1222 = vmatpush1.msra.mxu0 0.0
    %1223 = vmatprep.subr.mxu0 0.0
    %1224 = vmatpush1.msra.mxu0 0.0
    %1225 = vmatprep.subr.mxu0 0.0
    %1226 = vmatpush1.msra.mxu0 0.0
    %1227 = vmatprep.subr.mxu0 0.0
    %1228 = vmatpush1.msra.mxu0 0.0
    %1229 = vmatprep.subr.mxu0 0.0
    %1230 = vmatpush1.msra.mxu0 0.0
    %1231 = vmatprep.subr.mxu0 0.0
    %1232 = vmatpush1.msra.mxu0 0.0
    %1233 = vmatprep.subr.mxu0 0.0
    %1234 = vmatpush1.msra.mxu0 0.0
    %1235 = vmatprep.subr.mxu0 0.0
    %1236 = vmatpush1.msra.mxu0 0.0
    %1237 = vmatprep.subr.mxu0 0.0
    %1238 = vmatpush1.msra.mxu0 0.0
    %1239 = vmatprep.subr.mxu0 0.0
    %1240 = vmatpush1.msra.mxu0 0.0
    %1241 = vmatprep.subr.mxu0 0.0
    %1242 = vmatpush1.msra.mxu0 0.0
    %1243 = vmatprep.subr.mxu0 0.0
    %1244 = vmatpush1.msra.mxu0 0.0
    %1245 = vmatprep.mubr.f32.mxu0 0.0
    %1246 = vmatmul.mubr.f32.gmra.mrb[0].mxu0 %v1179
    %v1247 = vpop.f32.mrb[0].mxu0
    %v1248 = vadd.f32 %v1174, %v1247
    %v1249 = vpop.f32.mrb[0].mxu0
    %1250 = vdwg.mxu0
    %v1251 = vmul.f32 %v1248, 0.2
    %v1252 = vtanh.pop %v1251
    %v1253 = vmul.f32 %v1252, 2.5
    %s1254 = scalar_lea.vmem [#allocation14], 24
    %1255 = vst [vmem:[%s1254] sm:$0xff] %v1253
    %s1256 = scalar_lea.vmem [#allocation3], 32
    %v1257 = vld [vmem:[%s1256] sm:$0xff]
    %v1258 = vld [vmem:[#allocation9] sm:$0xff]
    %v1259 = vld [vmem:[#allocation9 + $0x8] sm:$0xff]
    %v1260 = vld [vmem:[#allocation9 + $0x10] sm:$0xff]
    %v1261 = vld [vmem:[#allocation9 + $0x18] sm:$0xff]
    %v1262 = vld [vmem:[#allocation9 + $0x20] sm:$0xff]
    %v1263 = vld [vmem:[#allocation9 + $0x28] sm:$0xff]
    %v1264 = vld [vmem:[#allocation9 + $0x30] sm:$0xff]
    %v1265 = vld [vmem:[#allocation9 + $0x38] sm:$0xff]
    %v1266 = vld [vmem:[#allocation9 + $0x40] sm:$0xff]
    %v1267 = vld [vmem:[#allocation9 + $0x48] sm:$0xff]
    %v1268 = vld [vmem:[#allocation9 + $0x50] sm:$0xff]
    %v1269 = vld [vmem:[#allocation9 + $0x58] sm:$0xff]
    %v1270 = vld [vmem:[#allocation11] sm:$0xff]
    %v1271 = vld [vmem:[#allocation11 + $0x8] sm:$0xff]
    %v1272 = vld [vmem:[#allocation11 + $0x10] sm:$0xff]
    %v1273 = vld [vmem:[#allocation11 + $0x18] sm:$0xff]
    %1274 = vmatprep.subr.mxu0 0.0
    %1275 = vmatpush1.msra.mxu0 %v1270
    %1276 = vmatprep.subr.mxu0 0.0
    %1277 = vmatpush1.msra.mxu0 %v1271
    %1278 = vmatprep.subr.mxu0 0.0
    %1279 = vmatpush1.msra.mxu0 %v1272
    %1280 = vmatprep.subr.mxu0 0.0
    %1281 = vmatpush1.msra.mxu0 %v1273
    %1282 = vmatprep.subr.mxu0 0.0
    %1283 = vmatpush1.msra.mxu0 0.0
    %1284 = vmatprep.subr.mxu0 0.0
    %1285 = vmatpush1.msra.mxu0 0.0
    %1286 = vmatprep.subr.mxu0 0.0
    %1287 = vmatpush1.msra.mxu0 0.0
    %1288 = vmatprep.subr.mxu0 0.0
    %1289 = vmatpush1.msra.mxu0 0.0
    %1290 = vmatprep.subr.mxu0 0.0
    %1291 = vmatpush1.msra.mxu0 0.0
    %1292 = vmatprep.subr.mxu0 0.0
    %1293 = vmatpush1.msra.mxu0 0.0
    %1294 = vmatprep.subr.mxu0 0.0
    %1295 = vmatpush1.msra.mxu0 0.0
    %1296 = vmatprep.subr.mxu0 0.0
    %1297 = vmatpush1.msra.mxu0 0.0
    %1298 = vmatprep.subr.mxu0 0.0
    %1299 = vmatpush1.msra.mxu0 0.0
    %1300 = vmatprep.subr.mxu0 0.0
    %1301 = vmatpush1.msra.mxu0 0.0
    %1302 = vmatprep.subr.mxu0 0.0
    %1303 = vmatpush1.msra.mxu0 0.0
    %1304 = vmatprep.subr.mxu0 0.0
    %1305 = vmatpush1.msra.mxu0 0.0
    %1306 = vmatprep.subr.mxu0 0.0
    %1307 = vmatpush1.msra.mxu0 0.0
    %1308 = vmatprep.subr.mxu0 0.0
    %1309 = vmatpush1.msra.mxu0 0.0
    %1310 = vmatprep.subr.mxu0 0.0
    %1311 = vmatpush1.msra.mxu0 0.0
    %1312 = vmatprep.subr.mxu0 0.0
    %1313 = vmatpush1.msra.mxu0 0.0
    %1314 = vmatprep.subr.mxu0 0.0
    %1315 = vmatpush1.msra.mxu0 0.0
    %1316 = vmatprep.subr.mxu0 0.0
    %1317 = vmatpush1.msra.mxu0 0.0
    %1318 = vmatprep.subr.mxu0 0.0
    %1319 = vmatpush1.msra.mxu0 0.0
    %1320 = vmatprep.subr.mxu0 0.0
    %1321 = vmatpush1.msra.mxu0 0.0
    %1322 = vmatprep.subr.mxu0 0.0
    %1323 = vmatpush1.msra.mxu0 0.0
    %1324 = vmatprep.subr.mxu0 0.0
    %1325 = vmatpush1.msra.mxu0 0.0
    %1326 = vmatprep.subr.mxu0 0.0
    %1327 = vmatpush1.msra.mxu0 0.0
    %1328 = vmatprep.subr.mxu0 0.0
    %1329 = vmatpush1.msra.mxu0 0.0
    %1330 = vmatprep.subr.mxu0 0.0
    %1331 = vmatpush1.msra.mxu0 0.0
    %1332 = vmatprep.subr.mxu0 0.0
    %1333 = vmatpush1.msra.mxu0 0.0
    %1334 = vmatprep.subr.mxu0 0.0
    %1335 = vmatpush1.msra.mxu0 0.0
    %1336 = vmatprep.subr.mxu0 0.0
    %1337 = vmatpush1.msra.mxu0 0.0
    %1338 = vmatprep.mubr.f32.mxu0 0.0
    %1339 = vmatmul.mubr.f32.gmra.mrb[0].mxu0 %v1179
    %v1340 = vpop.f32.mrb[0].mxu0
    %v1341 = vadd.f32 0.0, %v1340
    %v1342 = vpop.f32.mrb[0].mxu0
    %1343 = vdwg.mxu0
    %v1345 = vsel %vm204, %v1257, 0
    %1347 = vmatprep.subr.mxu0 0.0
    %1348 = vmatpush1.msra.mxu0 %v1258
    %1349 = vmatprep.subr.mxu0 0.0
    %1350 = vmatpush1.msra.mxu0 %v1259
    %1351 = vmatprep.subr.mxu0 0.0
    %1352 = vmatpush1.msra.mxu0 %v1260
    %1353 = vmatprep.subr.mxu0 0.0
    %1354 = vmatpush1.msra.mxu0 %v1261
    %1355 = vmatprep.subr.mxu0 0.0
    %1356 = vmatpush1.msra.mxu0 %v1262
    %1357 = vmatprep.subr.mxu0 0.0
    %1358 = vmatpush1.msra.mxu0 %v1263
    %1359 = vmatprep.subr.mxu0 0.0
    %1360 = vmatpush1.msra.mxu0 %v1264
    %1361 = vmatprep.subr.mxu0 0.0
    %1362 = vmatpush1.msra.mxu0 %v1265
    %1363 = vmatprep.subr.mxu0 0.0
    %1364 = vmatpush1.msra.mxu0 %v1266
    %1365 = vmatprep.subr.mxu0 0.0
    %1366 = vmatpush1.msra.mxu0 %v1267
    %1367 = vmatprep.subr.mxu0 0.0
    %1368 = vmatpush1.msra.mxu0 %v1268
    %1369 = vmatprep.subr.mxu0 0.0
    %1370 = vmatpush1.msra.mxu0 %v1269
    %1371 = vmatprep.subr.mxu0 0.0
    %1372 = vmatpush1.msra.mxu0 0.0
    %1373 = vmatprep.subr.mxu0 0.0
    %1374 = vmatpush1.msra.mxu0 0.0
    %1375 = vmatprep.subr.mxu0 0.0
    %1376 = vmatpush1.msra.mxu0 0.0
    %1377 = vmatprep.subr.mxu0 0.0
    %1378 = vmatpush1.msra.mxu0 0.0
    %1379 = vmatprep.subr.mxu0 0.0
    %1380 = vmatpush1.msra.mxu0 0.0
    %1381 = vmatprep.subr.mxu0 0.0
    %1382 = vmatpush1.msra.mxu0 0.0
    %1383 = vmatprep.subr.mxu0 0.0
    %1384 = vmatpush1.msra.mxu0 0.0
    %1385 = vmatprep.subr.mxu0 0.0
    %1386 = vmatpush1.msra.mxu0 0.0
    %1387 = vmatprep.subr.mxu0 0.0
    %1388 = vmatpush1.msra.mxu0 0.0
    %1389 = vmatprep.subr.mxu0 0.0
    %1390 = vmatpush1.msra.mxu0 0.0
    %1391 = vmatprep.subr.mxu0 0.0
    %1392 = vmatpush1.msra.mxu0 0.0
    %1393 = vmatprep.subr.mxu0 0.0
    %1394 = vmatpush1.msra.mxu0 0.0
    %1395 = vmatprep.subr.mxu0 0.0
    %1396 = vmatpush1.msra.mxu0 0.0
    %1397 = vmatprep.subr.mxu0 0.0
    %1398 = vmatpush1.msra.mxu0 0.0
    %1399 = vmatprep.subr.mxu0 0.0
    %1400 = vmatpush1.msra.mxu0 0.0
    %1401 = vmatprep.subr.mxu0 0.0
    %1402 = vmatpush1.msra.mxu0 0.0
    %1403 = vmatprep.subr.mxu0 0.0
    %1404 = vmatpush1.msra.mxu0 0.0
    %1405 = vmatprep.subr.mxu0 0.0
    %1406 = vmatpush1.msra.mxu0 0.0
    %1407 = vmatprep.subr.mxu0 0.0
    %1408 = vmatpush1.msra.mxu0 0.0
    %1409 = vmatprep.subr.mxu0 0.0
    %1410 = vmatpush1.msra.mxu0 0.0
    %1411 = vmatprep.mubr.f32.mxu0 0.0
    %1412 = vmatmul.mubr.f32.gmra.mrb[0].mxu0 %v1345
    %v1413 = vpop.f32.mrb[0].mxu0
    %v1414 = vadd.f32 %v1341, %v1413
    %v1415 = vpop.f32.mrb[0].mxu0
    %1416 = vdwg.mxu0
    %v1417 = vld [vmem:[%s5] sm:$0x1]
    %v1419 = vlaneseq
    %v1420 = vshrl.u32 %v1419, 7
    %v1421 = vsub.s32 0, %v1420
    %v1422 = vrot.slane %v1417, %v1421
    %v1424 = vadd.f32 %v1414, %v1422
    %v1425 = vxor.u32 %v1424, 2147483648
    %v1426 = vmul.f32 %v1425, 1.442695
    %v1427 = vpow.pop %v1426
    %v1428 = vadd.f32 %v1427, 1.0
    %v1429 = vrcp.pop %v1428
    %v1430 = vmul.f32 1.0, %v1429
    %v1431 = vtanh.pop %v1424
    %v1432 = vmul.f32 %v1430, %v1158
    %1434 = vrot.lane.b32.xlu0 %v1431, 64
    %v1435 = vpop.permute.xlu0 %1434
    %v1437 = vmul.f32 %v1430, %v1435
    %1439 = vrot.lane.b32.xlu0 %v1437, 32
    %v1440 = vpop.permute.xlu0 %1439
    %v1442 = vadd.f32 %v1432, %v1440
    %v1443 = vtanh.pop %v1442
    %1445 = vrot.lane.b32.xlu0 %v1443, 64
    %v1446 = vpop.permute.xlu0 %1445
    %v1448 = vmul.f32 %v1430, %v1446
    %v1449 = vld [vmem:[#allocation12] sm:$0xff]
    %v1450 = vld [vmem:[#allocation12 + $0x8] sm:$0xff]
    %v1451 = vld [vmem:[#allocation12 + $0x10] sm:$0xff]
    %v1452 = vld [vmem:[#allocation12 + $0x18] sm:$0xff]
    %v1453 = vld [vmem:[%s7] sm:$0x1]
    %v1455 = vlaneseq
    %v1456 = vshrl.u32 %v1455, 7
    %v1457 = vsub.s32 0, %v1456
    %v1458 = vrot.slane %v1453, %v1457
    %1461 = vrot.lane.b32.xlu0 %v1448, 32
    %v1462 = vpop.permute.xlu0 %1461
    %v1463 = vsel %vm130, %v1462, 0
    %1465 = vmatprep.subr.mxu0 0.0
    %1466 = vmatpush1.msra.mxu0 %v1449
    %1467 = vmatprep.subr.mxu0 0.0
    %1468 = vmatpush1.msra.mxu0 %v1450
    %1469 = vmatprep.subr.mxu0 0.0
    %1470 = vmatpush1.msra.mxu0 %v1451
    %1471 = vmatprep.subr.mxu0 0.0
    %1472 = vmatpush1.msra.mxu0 %v1452
    %1473 = vmatprep.subr.mxu0 0.0
    %1474 = vmatpush1.msra.mxu0 0.0
    %1475 = vmatprep.subr.mxu0 0.0
    %1476 = vmatpush1.msra.mxu0 0.0
    %1477 = vmatprep.subr.mxu0 0.0
    %1478 = vmatpush1.msra.mxu0 0.0
    %1479 = vmatprep.subr.mxu0 0.0
    %1480 = vmatpush1.msra.mxu0 0.0
    %1481 = vmatprep.subr.mxu0 0.0
    %1482 = vmatpush1.msra.mxu0 0.0
    %1483 = vmatprep.subr.mxu0 0.0
    %1484 = vmatpush1.msra.mxu0 0.0
    %1485 = vmatprep.subr.mxu0 0.0
    %1486 = vmatpush1.msra.mxu0 0.0
    %1487 = vmatprep.subr.mxu0 0.0
    %1488 = vmatpush1.msra.mxu0 0.0
    %1489 = vmatprep.subr.mxu0 0.0
    %1490 = vmatpush1.msra.mxu0 0.0
    %1491 = vmatprep.subr.mxu0 0.0
    %1492 = vmatpush1.msra.mxu0 0.0
    %1493 = vmatprep.subr.mxu0 0.0
    %1494 = vmatpush1.msra.mxu0 0.0
    %1495 = vmatprep.subr.mxu0 0.0
    %1496 = vmatpush1.msra.mxu0 0.0
    %1497 = vmatprep.subr.mxu0 0.0
    %1498 = vmatpush1.msra.mxu0 0.0
    %1499 = vmatprep.subr.mxu0 0.0
    %1500 = vmatpush1.msra.mxu0 0.0
    %1501 = vmatprep.subr.mxu0 0.0
    %1502 = vmatpush1.msra.mxu0 0.0
    %1503 = vmatprep.subr.mxu0 0.0
    %1504 = vmatpush1.msra.mxu0 0.0
    %1505 = vmatprep.subr.mxu0 0.0
    %1506 = vmatpush1.msra.mxu0 0.0
    %1507 = vmatprep.subr.mxu0 0.0
    %1508 = vmatpush1.msra.mxu0 0.0
    %1509 = vmatprep.subr.mxu0 0.0
    %1510 = vmatpush1.msra.mxu0 0.0
    %1511 = vmatprep.subr.mxu0 0.0
    %1512 = vmatpush1.msra.mxu0 0.0
    %1513 = vmatprep.subr.mxu0 0.0
    %1514 = vmatpush1.msra.mxu0 0.0
    %1515 = vmatprep.subr.mxu0 0.0
    %1516 = vmatpush1.msra.mxu0 0.0
    %1517 = vmatprep.subr.mxu0 0.0
    %1518 = vmatpush1.msra.mxu0 0.0
    %1519 = vmatprep.subr.mxu0 0.0
    %1520 = vmatpush1.msra.mxu0 0.0
    %1521 = vmatprep.subr.mxu0 0.0
    %1522 = vmatpush1.msra.mxu0 0.0
    %1523 = vmatprep.subr.mxu0 0.0
    %1524 = vmatpush1.msra.mxu0 0.0
    %1525 = vmatprep.subr.mxu0 0.0
    %1526 = vmatpush1.msra.mxu0 0.0
    %1527 = vmatprep.subr.mxu0 0.0
    %1528 = vmatpush1.msra.mxu0 0.0
    %1529 = vmatprep.mubr.f32.mxu0 0.0
    %1530 = vmatmul.mubr.f32.gmra.mrb[0].mxu0 %v1463
    %v1531 = vpop.f32.mrb[0].mxu0
    %v1532 = vadd.f32 %v1458, %v1531
    %v1533 = vpop.f32.mrb[0].mxu0
    %1534 = vdwg.mxu0
    %v1535 = vmul.f32 %v1532, 0.2
    %v1536 = vtanh.pop %v1535
    %v1537 = vmul.f32 %v1536, 2.5
    %s1538 = scalar_lea.vmem [#allocation14], 32
    %1539 = vst [vmem:[%s1538] sm:$0xff] %v1537
    %1541 = vst.msk [vmem:[#allocation15] sm:$0xff] %vm130, %v1462
    %vm1542 = vcmask 523520
    %1543 = vst.msk [vmem:[#allocation15] sm:$0xff] %vm1542, %v1442
    // Predicated region
    $region58: #{tpu_custom_call.1} parent=1 // pred_check
      _
    $region59: #{tpu_custom_call.1} parent=1 // pred_check_branch
      %1545 = sbr.rel (0) target = $region61
    $region60: #{tpu_custom_call.1} parent=1 // pred_region
      %s1547 = ssub.s32 640, 640
      %1548 = vsyncadd [#allocation5], %s1547
      %s1549 = sshll.u32 [#allocation14], 4
      %s1550 = int_to_ptr.vmem [resolvable:$true] %s1549
      %1555 = dma.vmem_to_hbm [thread:$0]  %s1550, 640, %s8, [#allocation5], 128, 128, 8
    $region61: #{tpu_custom_call.1} parent=1 // pred_fallthru
      _
    // Predicated region
    $region62: #{tpu_custom_call.1} parent=1 // pred_check
      _
    $region63: #{tpu_custom_call.1} parent=1 // pred_check_branch
      %1557 = sbr.rel (0) target = $region65
    $region64: #{tpu_custom_call.1} parent=1 // pred_region
      %s1559 = ssub.s32 128, 128
      %1560 = vsyncadd [#allocation16], %s1559
      %s1562 = sshll.u32 [#allocation15], 4
      %s1563 = int_to_ptr.vmem [resolvable:$true] %s1562
      %1565 = dma.vmem_to_hbm [thread:$0]  %s1563, 128, %s9, [#allocation16]
    $region65: #{tpu_custom_call.1} parent=1 // pred_fallthru
      _
    // Predicated region
    $region66: #{tpu_custom_call.1} parent=1 // pred_check
      _
    $region67: #{tpu_custom_call.1} parent=1 // pred_check_branch
      %1567 = sbr.rel (0) target = $region69
    $region68: #{tpu_custom_call.1} parent=1 // pred_region
      %1568 = dma.done [#allocation5], 640
    $region69: #{tpu_custom_call.1} parent=1 // pred_fallthru
      _
    // Predicated region
    $region70: #{tpu_custom_call.1} parent=1 // pred_check
      _
    $region71: #{tpu_custom_call.1} parent=1 // pred_check_branch
      %1570 = sbr.rel (0) target = $region73
    $region72: #{tpu_custom_call.1} parent=1 // pred_region
      %1571 = dma.done [#allocation16], 128
    $region73: #{tpu_custom_call.1} parent=1 // pred_fallthru
      _
    %1572 = vsyncpa [#allocation4], 1
    %1573 = vsyncpa [#allocation7], 1
    %1574 = vsyncpa [#allocation10], 1
    %1575 = vsyncpa [#allocation13], 1
    %1576 = vsyncpa [#allocation5], 1
    %1577 = vsyncpa [#allocation16], 1

</llo_original>
